<compile_context>
chip_gen: v7x
topology: tpu7x:2x2x1
jax: 0.10.0
libtpu: 0.0.40
codegen_flags: <defaults>
</compile_context>

<pallas_src>
import functools

import jax
import jax.numpy as jnp
from jax.experimental import pallas as pl
from jax.experimental.pallas import tpu as pltpu

ROW_PACK = 16          # bf16 sublane packing: 16-row granularity for batch tiles.
MIN_MXU_M = 256        # Don't shrink the MXU M dim below this when splitting for v7x.


def _round_up(x: int, m: int) -> int:
    return ((x + m - 1) // m) * m


def mlp_kernel(x_ref, w1_ref, b1_ref, w2_ref, b2_ref, o_ref):
    """Fused Linear -> ReLU -> Linear on one (TILE_B, ...) batch tile.

    x_ref : (TILE_B, D_in)   f32  (cast to bf16 in-kernel; hides under DMA/MXU)
    w1_ref: (D_in, H)        bf16 (VMEM-resident across grid)
    b1_ref: (1, H)           f32  (VMEM-resident across grid)
    w2_ref: (H, D_out)       bf16 (VMEM-resident across grid)
    b2_ref: (1, D_out)       f32  (VMEM-resident across grid)
    o_ref : (TILE_B, D_out)  f32  (last dim == full array dim -> legal block)
    """
    # In-kernel f32 -> bf16 cast: free on the VPU, saves a wrapper-side HBM pass.
    x = x_ref[...].astype(jnp.bfloat16)
    # First linear: bf16 x bf16 -> f32 accumulate on the MXU.
    h = jnp.dot(x, w1_ref[...], preferred_element_type=jnp.float32)   # (TILE_B, H) f32
    h = jnp.maximum(h + b1_ref[...], 0.0)                             # f32 epilogue
    # Second linear: cast activations back to bf16 for the MXU, f32 accumulate.
    y = jnp.dot(h.astype(w2_ref.dtype), w2_ref[...],
                preferred_element_type=jnp.float32)                   # (TILE_B, D_out)
    o_ref[...] = (y + b2_ref[...]).astype(o_ref.dtype)


def prepare_params(w1, b1, w2, b2):
    """One-time parameter prep, hoisted out of the per-call forward path.

    Casts weights to bf16 (MXU operands) and biases to f32 (epilogue). Call once
    at model setup; the forward's defensive casts then become trace-time no-ops.
    """
    return (w1.astype(jnp.bfloat16), b1.astype(jnp.float32),
            w2.astype(jnp.bfloat16), b2.astype(jnp.float32))


def _vmem_limit_bytes(tile_b, d_in, hidden, d_out):
    """Generation-aware VMEM limit from actual buffer sizes, capped per chip."""
    try:
        phys = pltpu.get_tpu_info().vmem_capacity_bytes
    except Exception:
        phys = 64 * 1024 * 1024        # conservative: v7x per-TC physical VMEM
    resident = 2 * (d_in * hidden * 2 + hidden * d_out * 2 + hidden * 4 + d_out * 4)
    streams = 2 * tile_b * d_in * 4 + 2 * tile_b * d_out * 4   # double-buffered x/out tiles
    scratch = 2 * tile_b * hidden * 4 + (4 << 20)              # intermediates + headroom
    needed = resident + streams + scratch
    return int(min(max(needed, 32 << 20), phys * 3 // 4))


@functools.partial(jax.jit, static_argnames=("tile_b",))
def model_base_forward(x, w1, b1, w2, b2, *, tile_b: int = 512):
    """Pallas forward for ModelBase wrapping Linear -> ReLU -> Linear.

    x  : (B, D_in)   f32
    w1 : (D_in, H)   bf16 (or f32; cast is a no-op when prepared), b1 : (1, H)
    w2 : (H, D_out)  bf16 (or f32),                               b2 : (1, D_out)
    returns (B, D_out) f32
    """
    B, D_in = x.shape
    H = w1.shape[1]
    D_out = w2.shape[1]

    # Defensive dtype normalization — no-ops when params came from prepare_params().
    if w1.dtype != jnp.bfloat16:
        w1 = w1.astype(jnp.bfloat16)
    if w2.dtype != jnp.bfloat16:
        w2 = w2.astype(jnp.bfloat16)
    if b1.dtype != jnp.float32:
        b1 = b1.astype(jnp.float32)
    if b2.dtype != jnp.float32:
        b2 = b2.astype(jnp.float32)

    # --- Batch tiling ---------------------------------------------------------
    # Clamp to 16-row granularity (bf16 sublane packing of the in-kernel cast).
    tile_b = min(tile_b, _round_up(B, ROW_PACK))
    tile_b = _round_up(tile_b, ROW_PACK)
    B_pad = _round_up(B, tile_b)

    # Prefer a grid of >= 2 tiles so v7x ("parallel" batch axis) can shard the
    # loop across its two TensorCores — but never shrink the MXU M dim below 256.
    if B_pad // tile_b < 2:
        half = tile_b // 2
        if half >= MIN_MXU_M and half % ROW_PACK == 0:
            tile_b = half
            B_pad = _round_up(B, tile_b)

    if B_pad != B:
        x = jnp.pad(x, ((0, B_pad - B), (0, 0)))

    grid = (B_pad // tile_b,)

    # Advisory cost estimate for XLA's scheduler.
    flops = 2 * B_pad * D_in * H + 2 * B_pad * H * D_out
    bytes_accessed = (
        B_pad * D_in * 4           # x (f32)
        + D_in * H * 2 + H * 4     # w1 (bf16), b1 (f32)
        + H * D_out * 2 + D_out * 4
        + B_pad * D_out * 4        # out (f32, unpadded lanes)
    )

    out = pl.pallas_call(
        mlp_kernel,
        out_shape=jax.ShapeDtypeStruct((B_pad, D_out), jnp.float32),
        grid_spec=pltpu.PrefetchScalarGridSpec(
            num_scalar_prefetch=0,
            grid=grid,
            in_specs=[
                # Batch tile of x moves with the grid (f32; cast in-kernel).
                pl.BlockSpec((tile_b, D_in), lambda i: (i, 0)),
                # Weights / biases: constant index_map -> VMEM-resident across iterations.
                pl.BlockSpec((D_in, H), lambda i: (0, 0)),
                pl.BlockSpec((1, H), lambda i: (0, 0)),
                pl.BlockSpec((H, D_out), lambda i: (0, 0)),
                pl.BlockSpec((1, D_out), lambda i: (0, 0)),
            ],
            # Last block dim == full array dim (D_out), so no lane padding and no
            # post-kernel slice pass; 4x fewer output HBM bytes for D_out=32.
            out_specs=pl.BlockSpec((tile_b, D_out), lambda i: (i, 0)),
        ),
        compiler_params=pltpu.CompilerParams(
            dimension_semantics=("parallel",),   # v7x: shard batch loop over 2 TCs
            vmem_limit_bytes=_vmem_limit_bytes(tile_b, D_in, H, D_out),
        ),
        cost_estimate=pl.CostEstimate(
            flops=flops, transcendentals=0, bytes_accessed=bytes_accessed),
    )(x, w1, b1, w2, b2)

    # Strip batch padding (trace-time no-op when B_pad == B).
    if B_pad != B:
        out = out[:B]
    return out


def reference_forward(x, w1, b1, w2, b2):
    """Pure-JAX reference with the same bf16-operand / f32-accumulate numerics."""
    xb = x.astype(jnp.bfloat16).astype(jnp.float32)
    w1b = w1.astype(jnp.bfloat16).astype(jnp.float32)
    w2b = w2.astype(jnp.bfloat16).astype(jnp.float32)
    h = jnp.maximum(
        jnp.dot(xb, w1b, precision=jax.lax.Precision.HIGHEST) + b1, 0.0)
    hb = h.astype(jnp.bfloat16).astype(jnp.float32)
    return jnp.dot(hb, w2b, precision=jax.lax.Precision.HIGHEST) + b2


if __name__ == "__main__":
    # Small but MXU-relevant shapes: batch=1024, in=128, hidden=256, out=32.
    # tile_b=512 -> grid of 2 even batch tiles (both v7x TCs busy, MXU M=512).
    B, D_IN, HID, D_OUT = 1024, 128, 256, 32

    key = jax.random.PRNGKey(0)
    k_x, k_w1, k_b1, k_w2, k_b2 = jax.random.split(key, 5)

    x = jax.random.normal(k_x, (B, D_IN), dtype=jnp.float32)

    # Deterministic parameter init (PyTorch nn.Linear-style uniform bounds).
    bound1 = 1.0 / jnp.sqrt(D_IN)
    bound2 = 1.0 / jnp.sqrt(HID)
    w1 = jax.random.uniform(k_w1, (D_IN, HID), jnp.float32, -bound1, bound1)
    b1 = jax.random.uniform(k_b1, (1, HID), jnp.float32, -bound1, bound1)
    w2 = jax.random.uniform(k_w2, (HID, D_OUT), jnp.float32, -bound2, bound2)
    b2 = jax.random.uniform(k_b2, (1, D_OUT), jnp.float32, -bound2, bound2)

    # One-time parameter prep (casts hoisted out of the per-call forward path).
    w1_p, b1_p, w2_p, b2_p = prepare_params(w1, b1, w2, b2)

    out = model_base_forward(x, w1_p, b1_p, w2_p, b2_p, tile_b=512)
    out = jax.block_until_ready(out)

    ref = reference_forward(x, w1, b1, w2, b2)
    assert out.shape == (B, D_OUT), out.shape
    # bf16 MXU operands with f32 accumulation: compare against a bf16-cast
    # reference with a correspondingly loosened tolerance.
    assert jnp.allclose(out, ref, atol=1e-2, rtol=1e-2), \
        f"mismatch vs reference; max abs err={jnp.max(jnp.abs(out - ref))}"

    print("KERNEL_OK")
</pallas_src>

<mosaic_0001>
module attributes {stable_mosaic.version = 11 : i64} {
  func.func @mlp_kernel(%arg0: i32, %arg1: memref<512x128xf32, #tpu.memory_space<vmem>>, %arg2: memref<128x256xbf16, #tpu.memory_space<vmem>>, %arg3: memref<1x256xf32, #tpu.memory_space<vmem>>, %arg4: memref<256x32xbf16, #tpu.memory_space<vmem>>, %arg5: memref<1x32xf32, #tpu.memory_space<vmem>>, %arg6: memref<512x32xf32, #tpu.memory_space<vmem>>) attributes {dimension_semantics = [#tpu.dimension_semantics<parallel>], iteration_bounds = array<i64: 2>, scalar_prefetch = 0 : i64, scratch_operands = 0 : i64, tpu.core_type = #tpu.core_type<tc>, window_params = [{transform_indices = @transform_0, window_bounds = array<i64: 512, 128>}, {pipeline_mode = #tpu.pipeline_mode<synchronous>, transform_indices = @transform_1, window_bounds = array<i64: 128, 256>}, {pipeline_mode = #tpu.pipeline_mode<synchronous>, transform_indices = @transform_2, window_bounds = array<i64: 1, 256>}, {pipeline_mode = #tpu.pipeline_mode<synchronous>, transform_indices = @transform_3, window_bounds = array<i64: 256, 32>}, {pipeline_mode = #tpu.pipeline_mode<synchronous>, transform_indices = @transform_4, window_bounds = array<i64: 1, 32>}, {transform_indices = @transform_5, window_bounds = array<i64: 512, 32>}]} {
    %c0 = arith.constant 0 : index
    %c0_0 = arith.constant 0 : index
    %0 = vector.load %arg1[%c0, %c0_0] : memref<512x128xf32, #tpu.memory_space<vmem>>, vector<512x128xf32>
    %1 = arith.truncf %0 : vector<512x128xf32> to vector<512x128xbf16>
    %c0_1 = arith.constant 0 : index
    %c0_2 = arith.constant 0 : index
    %2 = vector.load %arg2[%c0_1, %c0_2] : memref<128x256xbf16, #tpu.memory_space<vmem>>, vector<128x256xbf16>
    %cst = arith.constant dense<0.000000e+00> : vector<512x256xf32>
    %3 = tpu.matmul %1, %2, %cst {dimension_numbers = #tpu.dot_dimension_numbers<[1], [0], [0], [1], [0, 0, 1, 1], [], []>} : vector<512x128xbf16>, vector<128x256xbf16>, vector<512x256xf32> -> vector<512x256xf32>
    %c0_3 = arith.constant 0 : index
    %c0_4 = arith.constant 0 : index
    %4 = vector.load %arg3[%c0_3, %c0_4] : memref<1x256xf32, #tpu.memory_space<vmem>>, vector<1x256xf32>
    %5 = vector.broadcast %4 : vector<1x256xf32> to vector<512x256xf32>
    %6 = arith.addf %3, %5 : vector<512x256xf32>
    %cst_5 = arith.constant 0.000000e+00 : f32
    %7 = vector.broadcast %cst_5 : f32 to vector<512x256xf32>
    %8 = arith.maximumf %6, %7 : vector<512x256xf32>
    %9 = arith.truncf %8 : vector<512x256xf32> to vector<512x256xbf16>
    %c0_6 = arith.constant 0 : index
    %c0_7 = arith.constant 0 : index
    %10 = vector.load %arg4[%c0_6, %c0_7] : memref<256x32xbf16, #tpu.memory_space<vmem>>, vector<256x32xbf16>
    %cst_8 = arith.constant dense<0.000000e+00> : vector<512x32xf32>
    %11 = tpu.matmul %9, %10, %cst_8 {dimension_numbers = #tpu.dot_dimension_numbers<[1], [0], [0], [1], [0, 0, 1, 1], [], []>} : vector<512x256xbf16>, vector<256x32xbf16>, vector<512x32xf32> -> vector<512x32xf32>
    %c0_9 = arith.constant 0 : index
    %c0_10 = arith.constant 0 : index
    %12 = vector.load %arg5[%c0_9, %c0_10] : memref<1x32xf32, #tpu.memory_space<vmem>>, vector<1x32xf32>
    %13 = vector.broadcast %12 : vector<1x32xf32> to vector<512x32xf32>
    %14 = arith.addf %11, %13 : vector<512x32xf32>
    %c0_11 = arith.constant 0 : index
    %c0_12 = arith.constant 0 : index
    %15 = vector.load %arg6[%c0_11, %c0_12] : memref<512x32xf32, #tpu.memory_space<vmem>>, vector<512x32xf32>
    tpu.vector_store %arg6[%c0_11, %c0_12], %14 {strides = array<i32>} : memref<512x32xf32, #tpu.memory_space<vmem>>, vector<512x32xf32>,
    return
  }
  func.func @transform_0(%arg0: i32) -> (i32, i32) {
    %c0_i32 = arith.constant 0 : i32
    %c0_i32_0 = arith.constant 0 : i32
    return %arg0, %c0_i32 : i32, i32
  }
  func.func @transform_1(%arg0: i32) -> (i32, i32) {
    %c0_i32 = arith.constant 0 : i32
    %c0_i32_0 = arith.constant 0 : i32
    %c0_i32_1 = arith.constant 0 : i32
    return %c0_i32, %c0_i32_0 : i32, i32
  }
  func.func @transform_2(%arg0: i32) -> (i32, i32) {
    %c0_i32 = arith.constant 0 : i32
    %c0_i32_0 = arith.constant 0 : i32
    %c0_i32_1 = arith.constant 0 : i32
    return %c0_i32, %c0_i32_0 : i32, i32
  }
  func.func @transform_3(%arg0: i32) -> (i32, i32) {
    %c0_i32 = arith.constant 0 : i32
    %c0_i32_0 = arith.constant 0 : i32
    %c0_i32_1 = arith.constant 0 : i32
    return %c0_i32, %c0_i32_0 : i32, i32
  }
  func.func @transform_4(%arg0: i32) -> (i32, i32) {
    %c0_i32 = arith.constant 0 : i32
    %c0_i32_0 = arith.constant 0 : i32
    %c0_i32_1 = arith.constant 0 : i32
    return %c0_i32, %c0_i32_0 : i32, i32
  }
  func.func @transform_5(%arg0: i32) -> (i32, i32) {
    %c0_i32 = arith.constant 0 : i32
    %c0_i32_0 = arith.constant 0 : i32
    return %arg0, %c0_i32 : i32, i32
  }
}

</mosaic_0001>

<llo_original>
// kernel: model_base_forward.1
$region0: #{model_base_forward.1}
  #allocation0 [shape = 'u32[]', space=smem, size = 0x4, offset = 0x4, fixed_abs, tag = 'smem constant byte address 0x4 - core index']
  #allocation1 [shape = 'u32[144,128]{1,0:T(1,128)}', space=vmem, size = 0x12000, scoped, tag = 'internal scratch']
  %s0 = inlined_call_operand.hbm [shape: f32[1024,128], index: 0, kind: input, shape index: {}]
  %s1 = inlined_call_operand.vmem [shape: bf16[128,256], index: 1, kind: input, shape index: {}]
  %s2 = inlined_call_operand.vmem [shape: f32[1,256], index: 2, kind: input, shape index: {}]
  %s3 = inlined_call_operand.vmem [shape: bf16[256,32], index: 3, kind: input, shape index: {}]
  %s4 = inlined_call_operand.vmem [shape: f32[1,32], index: 4, kind: input, shape index: {}]
  %s5 = inlined_call_operand.vmem [shape: f32[1024,32], index: 5, kind: output, shape index: {}]
  %s6 = sld [smem:[#allocation0]]
  $region57: #{model_base_forward.1} parent=0
    _
  %s8 = ssub.s32 1, %s6
  %s9 = scalar_select 0, %s8, %s6
  $region1: #{model_base_forward.1} parent=0
    #allocation2 [shape = 'u8[524288]{0}', space=vmem, size = 0x80000, scoped, tag = 'input window, operand 0']
    #allocation3 [shape = 's32[2]{0}', space=sflag, size = 0x8, scoped, tag = 'scoped memory for model_base_forward.1']
    %10 = vsyncpa [#allocation3], 0
    %s11 = scalar_lea.sflag [#allocation3], 1
    %12 = vsyncpa %s11, 0
    loop: start=0, step=1, limit=4
    $region2: #{model_base_forward.1} parent=1 // loop_pre_header
      _
    $region3: #{model_base_forward.1} parent=1 // loop_header
      %s14 = sphi 0, %s18
      %p15 = scmp.ge.s32.totalorder %s14, 4
      %s24 = sphi 0, %s26
      %s27 = sphi 0, %s24
      %s28 = sphi 0, %s27
      %s44 = sphi 0, %s28
      %s48 = sphi 0, %s48
      %s50 = sphi 0, %s48
      %s51 = sphi 0, %s50
      %s65 = sphi 0, %s51
      %s69 = sphi 0, %s69
      %s71 = sphi 0, %s69
      %s72 = sphi 0, %s71
      %s86 = sphi 0, %s72
      %s90 = sphi 0, %s90
      %s92 = sphi 0, %s90
      %s93 = sphi 0, %s92
      %s107 = sphi 0, %s93
      %s111 = sphi 0, %s111
      %s113 = sphi 0, %s111
      %s114 = sphi 0, %s113
      %s128 = sphi 0, %s114
      %s134 = sphi 0, %s136
      %s137 = sphi 0, %s134
      %s138 = sphi 0, %s137
      %s154 = sphi 0, %s138
    $region4: #{model_base_forward.1} parent=1 // loop_header_branch
      %17 = sbr.rel (%p15) target = $region8
    $region5: #{model_base_forward.1} parent=1 // loop_body
      %s19 = ssub.s32 %s14, 1
      %s20 = ssub.s32 %s14, 2
      %s21 = sadd.s32 %s14, 1
      %s22 = ssub.s32 %s14, %s21
      %p23 = scmp.eq.s32.totalorder %s22, 0
      %s25 = sadd.s32 %s24, 1
      %s26 = scalar_select %p23, %s24, %s25
      %p29 = pneg %p23
      %p30 = scmp.eq.s32.totalorder %s14, 1
      %p31 = por %p29, %p30
      %p32 = scmp.ne.s32.totalorder %s24, %s27
      %p33 = scmp.eq.s32.totalorder %s14, 0
      %p34 = por %p32, %p33
      %p35 = scmp.ne.s32.totalorder %s24, %s27
      %p36 = scmp.eq.s32.totalorder %s19, 1
      %p37 = por %p35, %p36
      %p38 = scmp.ne.s32.totalorder %s27, %s28
      %p39 = scmp.eq.s32.totalorder %s19, 0
      %p40 = por %p38, %p39
      %p41 = scmp.ne.s32.totalorder %s27, %s28
      %p42 = scmp.eq.s32.totalorder %s20, 1
      %p43 = por %p41, %p42
      %p45 = scmp.ne.s32.totalorder %s28, %s44
      %p46 = scmp.eq.s32.totalorder %s20, 0
      %p47 = por %p45, %p46
      %s49 = sadd.s32 %s48, 1
      %p52 = scmp.eq.s32.totalorder %s14, 1
      %p53 = scmp.ne.s32.totalorder %s48, %s50
      %p54 = scmp.eq.s32.totalorder %s14, 0
      %p55 = por %p53, %p54
      %p56 = scmp.ne.s32.totalorder %s48, %s50
      %p57 = scmp.eq.s32.totalorder %s19, 1
      %p58 = por %p56, %p57
      %p59 = scmp.ne.s32.totalorder %s50, %s51
      %p60 = scmp.eq.s32.totalorder %s19, 0
      %p61 = por %p59, %p60
      %p62 = scmp.ne.s32.totalorder %s50, %s51
      %p63 = scmp.eq.s32.totalorder %s20, 1
      %p64 = por %p62, %p63
      %p66 = scmp.ne.s32.totalorder %s51, %s65
      %p67 = scmp.eq.s32.totalorder %s20, 0
      %p68 = por %p66, %p67
      %s70 = sadd.s32 %s69, 1
      %p73 = scmp.eq.s32.totalorder %s14, 1
      %p74 = scmp.ne.s32.totalorder %s69, %s71
      %p75 = scmp.eq.s32.totalorder %s14, 0
      %p76 = por %p74, %p75
      %p77 = scmp.ne.s32.totalorder %s69, %s71
      %p78 = scmp.eq.s32.totalorder %s19, 1
      %p79 = por %p77, %p78
      %p80 = scmp.ne.s32.totalorder %s71, %s72
      %p81 = scmp.eq.s32.totalorder %s19, 0
      %p82 = por %p80, %p81
      %p83 = scmp.ne.s32.totalorder %s71, %s72
      %p84 = scmp.eq.s32.totalorder %s20, 1
      %p85 = por %p83, %p84
      %p87 = scmp.ne.s32.totalorder %s72, %s86
      %p88 = scmp.eq.s32.totalorder %s20, 0
      %p89 = por %p87, %p88
      %s91 = sadd.s32 %s90, 1
      %p94 = scmp.eq.s32.totalorder %s14, 1
      %p95 = scmp.ne.s32.totalorder %s90, %s92
      %p96 = scmp.eq.s32.totalorder %s14, 0
      %p97 = por %p95, %p96
      %p98 = scmp.ne.s32.totalorder %s90, %s92
      %p99 = scmp.eq.s32.totalorder %s19, 1
      %p100 = por %p98, %p99
      %p101 = scmp.ne.s32.totalorder %s92, %s93
      %p102 = scmp.eq.s32.totalorder %s19, 0
      %p103 = por %p101, %p102
      %p104 = scmp.ne.s32.totalorder %s92, %s93
      %p105 = scmp.eq.s32.totalorder %s20, 1
      %p106 = por %p104, %p105
      %p108 = scmp.ne.s32.totalorder %s93, %s107
      %p109 = scmp.eq.s32.totalorder %s20, 0
      %p110 = por %p108, %p109
      %s112 = sadd.s32 %s111, 1
      %p115 = scmp.eq.s32.totalorder %s14, 1
      %p116 = scmp.ne.s32.totalorder %s111, %s113
      %p117 = scmp.eq.s32.totalorder %s14, 0
      %p118 = por %p116, %p117
      %p119 = scmp.ne.s32.totalorder %s111, %s113
      %p120 = scmp.eq.s32.totalorder %s19, 1
      %p121 = por %p119, %p120
      %p122 = scmp.ne.s32.totalorder %s113, %s114
      %p123 = scmp.eq.s32.totalorder %s19, 0
      %p124 = por %p122, %p123
      %p125 = scmp.ne.s32.totalorder %s113, %s114
      %p126 = scmp.eq.s32.totalorder %s20, 1
      %p127 = por %p125, %p126
      %p129 = scmp.ne.s32.totalorder %s114, %s128
      %p130 = scmp.eq.s32.totalorder %s20, 0
      %p131 = por %p129, %p130
      %s132 = ssub.s32 %s14, %s21
      %p133 = scmp.eq.s32.totalorder %s132, 0
      %s135 = sadd.s32 %s134, 1
      %s136 = scalar_select %p133, %s134, %s135
      %p139 = pneg %p133
      %p140 = scmp.eq.s32.totalorder %s14, 1
      %p141 = por %p139, %p140
      %p142 = scmp.ne.s32.totalorder %s134, %s137
      %p143 = scmp.eq.s32.totalorder %s14, 0
      %p144 = por %p142, %p143
      %p145 = scmp.ne.s32.totalorder %s134, %s137
      %p146 = scmp.eq.s32.totalorder %s19, 1
      %p147 = por %p145, %p146
      %p148 = scmp.ne.s32.totalorder %s137, %s138
      %p149 = scmp.eq.s32.totalorder %s19, 0
      %p150 = por %p148, %p149
      %p151 = scmp.ne.s32.totalorder %s137, %s138
      %p152 = scmp.eq.s32.totalorder %s20, 1
      %p153 = por %p151, %p152
      %p155 = scmp.ne.s32.totalorder %s138, %s154
      %p156 = scmp.eq.s32.totalorder %s20, 0
      %p157 = por %p155, %p156
      %p158 = scmp.le.s32.totalorder 1, %s14
      %p159 = scmp.lt.s32.totalorder %s14, 3
      %p160 = pnand %p158, %p159
      %p161 = pneg %p160
      // Predicated region
      $region9: #{model_base_forward.1} parent=5 // pred_check
        _
      $region10: #{model_base_forward.1} parent=5 // pred_check_branch
        %163 = sbr.rel (%p160) target = $region12
      $region11: #{model_base_forward.1} parent=5 // pred_region
        %s164 = ssub.s32 %s14, 1
        // Predicated region
        $region13: #{model_base_forward.1} parent=11 // pred_check
          %p165 = pneg %p61
        $region14: #{model_base_forward.1} parent=11 // pred_check_branch
          %167 = sbr.rel (%p165) target = $region16
        $region15: #{model_base_forward.1} parent=11 // pred_region
          _
        $region16: #{model_base_forward.1} parent=11 // pred_fallthru
          _
        // Predicated region
        $region17: #{model_base_forward.1} parent=11 // pred_check
          %p168 = pneg %p82
        $region18: #{model_base_forward.1} parent=11 // pred_check_branch
          %170 = sbr.rel (%p168) target = $region20
        $region19: #{model_base_forward.1} parent=11 // pred_region
          _
        $region20: #{model_base_forward.1} parent=11 // pred_fallthru
          _
        // Predicated region
        $region21: #{model_base_forward.1} parent=11 // pred_check
          %p171 = pneg %p103
        $region22: #{model_base_forward.1} parent=11 // pred_check_branch
          %173 = sbr.rel (%p171) target = $region24
        $region23: #{model_base_forward.1} parent=11 // pred_region
          _
        $region24: #{model_base_forward.1} parent=11 // pred_fallthru
          _
        // Predicated region
        $region25: #{model_base_forward.1} parent=11 // pred_check
          %p174 = pneg %p124
        $region26: #{model_base_forward.1} parent=11 // pred_check_branch
          %176 = sbr.rel (%p174) target = $region28
        $region27: #{model_base_forward.1} parent=11 // pred_region
          _
        $region28: #{model_base_forward.1} parent=11 // pred_fallthru
          _
      $region12: #{model_base_forward.1} parent=5 // pred_fallthru
        _
      %p177 = scmp.lt.s32.totalorder %s14, 2
      // Predicated region
      $region29: #{model_base_forward.1} parent=5 // pred_check
        %p178 = pneg %p177
      $region30: #{model_base_forward.1} parent=5 // pred_check_branch
        %180 = sbr.rel (%p178) target = $region32
      $region31: #{model_base_forward.1} parent=5 // pred_region
        // Predicated region
        $region33: #{model_base_forward.1} parent=31 // pred_check
          %p181 = pneg %p34
        $region34: #{model_base_forward.1} parent=31 // pred_check_branch
          %183 = sbr.rel (%p181) target = $region36
        $region35: #{model_base_forward.1} parent=31 // pred_region
          %s184 = sand.u32 %s24, 1
          %s185 = scalar_lea.sflag [#allocation3], %s184
          %s186 = sand.u32 %s24, 1
          %s187 = smul.addr %s186, 512
          %s188 = scalar_lea.vmem [#allocation2], %s187
          %s189 = smul.u32 64, %s14
          %s191 = ssub.s32 8192, 8192
          %192 = vsyncadd %s185, %s191
          %s193 = smul.addr %s189, 128
          %s194 = scalar_lea.hbm %s0, %s193
          %s195 = sshll.u32 %s188, 4
          %s196 = int_to_ptr.vmem [resolvable:$true] %s195
          %201 = dma.hbm_to_vmem [thread:$0]  %s194, 8192, %s196, %s185, 128, 128, 8
        $region36: #{model_base_forward.1} parent=31 // pred_fallthru
          _
      $region32: #{model_base_forward.1} parent=5 // pred_fallthru
        _
      %p202 = scmp.le.s32.totalorder 1, %s14
      %p203 = scmp.lt.s32.totalorder %s14, 3
      %p204 = pnand %p202, %p203
      %p205 = pneg %p204
      // Predicated region
      $region37: #{model_base_forward.1} parent=5 // pred_check
        _
      $region38: #{model_base_forward.1} parent=5 // pred_check_branch
        %207 = sbr.rel (%p204) target = $region40
      $region39: #{model_base_forward.1} parent=5 // pred_region
        %s208 = ssub.s32 %s14, 1
        %s209 = sand.u32 %s27, 1
        %s210 = scalar_lea.sflag [#allocation3], %s209
        %s211 = sand.u32 %s27, 1
        %s212 = smul.addr %s211, 512
        %s213 = scalar_lea.vmem [#allocation2], %s212
        // Predicated region
        $region41: #{model_base_forward.1} parent=39 // pred_check
          %p214 = pneg %p40
        $region42: #{model_base_forward.1} parent=39 // pred_check_branch
          %216 = sbr.rel (%p214) target = $region44
        $region43: #{model_base_forward.1} parent=39 // pred_region
          %217 = dma.done %s210, 8192
        $region44: #{model_base_forward.1} parent=39 // pred_fallthru
          _
        %s218 = sand.u32 %s27, 1
        %s219 = scalar_lea.sflag [#allocation3], %s218
        %s220 = sand.u32 %s27, 1
        %s221 = smul.addr %s220, 512
        %s222 = scalar_lea.vmem [#allocation2], %s221
        %p223 = pneg %p40
        %p224 = pneg %p37
        %p225 = pneg %p61
        %p226 = pneg %p58
        %p227 = pneg %p82
        %p228 = pneg %p79
        %p229 = pneg %p103
        %p230 = pneg %p100
        %p231 = pneg %p124
        %p232 = pneg %p121
        %p233 = pneg %p150
        %p234 = pneg %p147
        %s235 = smul.u32 64, %s19
        %p236 = scmp.lt.s32.totalorder %s235, 127
        %s237 = scalar_select %p236, %s235, 127
        %s238 = smul.addr %s237, 8
        %s239 = scalar_lea.vmem %s5, %s238
        %s240 = smul.u32 64, %s19
        %s241 = smul.u32 64, %s19
        %p242 = scmp.lt.s32.totalorder %s241, 127
        %s243 = scalar_select %p242, %s241, 127
        %s244 = smul.addr %s243, 8
        %s245 = scalar_lea.vmem %s5, %s244
        %s246 = smul.u32 64, %s19
        %v248 = vld [vmem:[%s213] sm:$0xff]
        %v249 = vld [vmem:[%s213 + $0x8] sm:$0xff]
        %v250 = vld [vmem:[%s213 + $0x10] sm:$0xff]
        %v251 = vld [vmem:[%s213 + $0x18] sm:$0xff]
        %v252 = vld [vmem:[%s213 + $0x20] sm:$0xff]
        %v253 = vld [vmem:[%s213 + $0x28] sm:$0xff]
        %v254 = vld [vmem:[%s213 + $0x30] sm:$0xff]
        %v255 = vld [vmem:[%s213 + $0x38] sm:$0xff]
        %v256 = vld [vmem:[%s213 + $0x40] sm:$0xff]
        %v257 = vld [vmem:[%s213 + $0x48] sm:$0xff]
        %v258 = vld [vmem:[%s213 + $0x50] sm:$0xff]
        %v259 = vld [vmem:[%s213 + $0x58] sm:$0xff]
        %v260 = vld [vmem:[%s213 + $0x60] sm:$0xff]
        %v261 = vld [vmem:[%s213 + $0x68] sm:$0xff]
        %v262 = vld [vmem:[%s213 + $0x70] sm:$0xff]
        %v263 = vld [vmem:[%s213 + $0x78] sm:$0xff]
        %v264 = vld [vmem:[%s213 + $0x80] sm:$0xff]
        %v265 = vld [vmem:[%s213 + $0x88] sm:$0xff]
        %v266 = vld [vmem:[%s213 + $0x90] sm:$0xff]
        %v267 = vld [vmem:[%s213 + $0x98] sm:$0xff]
        %v268 = vld [vmem:[%s213 + $0xa0] sm:$0xff]
        %v269 = vld [vmem:[%s213 + $0xa8] sm:$0xff]
        %v270 = vld [vmem:[%s213 + $0xb0] sm:$0xff]
        %v271 = vld [vmem:[%s213 + $0xb8] sm:$0xff]
        %v272 = vld [vmem:[%s213 + $0xc0] sm:$0xff]
        %v273 = vld [vmem:[%s213 + $0xc8] sm:$0xff]
        %v274 = vld [vmem:[%s213 + $0xd0] sm:$0xff]
        %v275 = vld [vmem:[%s213 + $0xd8] sm:$0xff]
        %v276 = vld [vmem:[%s213 + $0xe0] sm:$0xff]
        %v277 = vld [vmem:[%s213 + $0xe8] sm:$0xff]
        %v278 = vld [vmem:[%s213 + $0xf0] sm:$0xff]
        %v279 = vld [vmem:[%s213 + $0xf8] sm:$0xff]
        %v280 = vld [vmem:[%s213 + $0x100] sm:$0xff]
        %v281 = vld [vmem:[%s213 + $0x108] sm:$0xff]
        %v282 = vld [vmem:[%s213 + $0x110] sm:$0xff]
        %v283 = vld [vmem:[%s213 + $0x118] sm:$0xff]
        %v284 = vld [vmem:[%s213 + $0x120] sm:$0xff]
        %v285 = vld [vmem:[%s213 + $0x128] sm:$0xff]
        %v286 = vld [vmem:[%s213 + $0x130] sm:$0xff]
        %v287 = vld [vmem:[%s213 + $0x138] sm:$0xff]
        %v288 = vld [vmem:[%s213 + $0x140] sm:$0xff]
        %v289 = vld [vmem:[%s213 + $0x148] sm:$0xff]
        %v290 = vld [vmem:[%s213 + $0x150] sm:$0xff]
        %v291 = vld [vmem:[%s213 + $0x158] sm:$0xff]
        %v292 = vld [vmem:[%s213 + $0x160] sm:$0xff]
        %v293 = vld [vmem:[%s213 + $0x168] sm:$0xff]
        %v294 = vld [vmem:[%s213 + $0x170] sm:$0xff]
        %v295 = vld [vmem:[%s213 + $0x178] sm:$0xff]
        %v296 = vld [vmem:[%s213 + $0x180] sm:$0xff]
        %v297 = vld [vmem:[%s213 + $0x188] sm:$0xff]
        %v298 = vld [vmem:[%s213 + $0x190] sm:$0xff]
        %v299 = vld [vmem:[%s213 + $0x198] sm:$0xff]
        %v300 = vld [vmem:[%s213 + $0x1a0] sm:$0xff]
        %v301 = vld [vmem:[%s213 + $0x1a8] sm:$0xff]
        %v302 = vld [vmem:[%s213 + $0x1b0] sm:$0xff]
        %v303 = vld [vmem:[%s213 + $0x1b8] sm:$0xff]
        %v304 = vld [vmem:[%s213 + $0x1c0] sm:$0xff]
        %v305 = vld [vmem:[%s213 + $0x1c8] sm:$0xff]
        %v306 = vld [vmem:[%s213 + $0x1d0] sm:$0xff]
        %v307 = vld [vmem:[%s213 + $0x1d8] sm:$0xff]
        %v308 = vld [vmem:[%s213 + $0x1e0] sm:$0xff]
        %v309 = vld [vmem:[%s213 + $0x1e8] sm:$0xff]
        %v310 = vld [vmem:[%s213 + $0x1f0] sm:$0xff]
        %v311 = vld [vmem:[%s213 + $0x1f8] sm:$0xff]
        %v312 = vpack.c.bf16 %v249, %v248
        %v313 = vpack.c.bf16 %v251, %v250
        %v314 = vpack.c.bf16 %v253, %v252
        %v315 = vpack.c.bf16 %v255, %v254
        %v316 = vpack.c.bf16 %v257, %v256
        %v317 = vpack.c.bf16 %v259, %v258
        %v318 = vpack.c.bf16 %v261, %v260
        %v319 = vpack.c.bf16 %v263, %v262
        %v320 = vpack.c.bf16 %v265, %v264
        %v321 = vpack.c.bf16 %v267, %v266
        %v322 = vpack.c.bf16 %v269, %v268
        %v323 = vpack.c.bf16 %v271, %v270
        %v324 = vpack.c.bf16 %v273, %v272
        %v325 = vpack.c.bf16 %v275, %v274
        %v326 = vpack.c.bf16 %v277, %v276
        %v327 = vpack.c.bf16 %v279, %v278
        %v328 = vpack.c.bf16 %v281, %v280
        %v329 = vpack.c.bf16 %v283, %v282
        %v330 = vpack.c.bf16 %v285, %v284
        %v331 = vpack.c.bf16 %v287, %v286
        %v332 = vpack.c.bf16 %v289, %v288
        %v333 = vpack.c.bf16 %v291, %v290
        %v334 = vpack.c.bf16 %v293, %v292
        %v335 = vpack.c.bf16 %v295, %v294
        %v336 = vpack.c.bf16 %v297, %v296
        %v337 = vpack.c.bf16 %v299, %v298
        %v338 = vpack.c.bf16 %v301, %v300
        %v339 = vpack.c.bf16 %v303, %v302
        %v340 = vpack.c.bf16 %v305, %v304
        %v341 = vpack.c.bf16 %v307, %v306
        %v342 = vpack.c.bf16 %v309, %v308
        %v343 = vpack.c.bf16 %v311, %v310
        %v344 = vld [vmem:[%s1] sm:$0xff]
        %v345 = vld [vmem:[%s1 + $0x8] sm:$0xff]
        %v346 = vld [vmem:[%s1 + $0x10] sm:$0xff]
        %v347 = vld [vmem:[%s1 + $0x18] sm:$0xff]
        %v348 = vld [vmem:[%s1 + $0x20] sm:$0xff]
        %v349 = vld [vmem:[%s1 + $0x28] sm:$0xff]
        %v350 = vld [vmem:[%s1 + $0x30] sm:$0xff]
        %v351 = vld [vmem:[%s1 + $0x38] sm:$0xff]
        %v352 = vld [vmem:[%s1 + $0x40] sm:$0xff]
        %v353 = vld [vmem:[%s1 + $0x48] sm:$0xff]
        %v354 = vld [vmem:[%s1 + $0x50] sm:$0xff]
        %v355 = vld [vmem:[%s1 + $0x58] sm:$0xff]
        %v356 = vld [vmem:[%s1 + $0x60] sm:$0xff]
        %v357 = vld [vmem:[%s1 + $0x68] sm:$0xff]
        %v358 = vld [vmem:[%s1 + $0x70] sm:$0xff]
        %v359 = vld [vmem:[%s1 + $0x78] sm:$0xff]
        %v360 = vld [vmem:[%s2] sm:$0x3]
        %v362 = vlaneseq
        %v363 = vshrl.u32 %v362, 7
        %v364 = vsub.s32 0, %v363
        %v365 = vrot.slane %v360, %v364
        %v366 = vlaneseq
        %v367 = vshrl.u32 %v366, 7
        %v368 = vsub.s32 1, %v367
        %v369 = vrot.slane %v360, %v368
        %v388 = vunpack.c.l.b16 %v344
        %v389 = vunpack.c.h.b16 %v344
        %v390 = vunpack.c.l.b16 %v345
        %v391 = vunpack.c.h.b16 %v345
        %v392 = vunpack.c.l.b16 %v346
        %v393 = vunpack.c.h.b16 %v346
        %v394 = vunpack.c.l.b16 %v347
        %v395 = vunpack.c.h.b16 %v347
        %v396 = vunpack.c.l.b16 %v348
        %v397 = vunpack.c.h.b16 %v348
        %v398 = vunpack.c.l.b16 %v349
        %v399 = vunpack.c.h.b16 %v349
        %v400 = vunpack.c.l.b16 %v350
        %v401 = vunpack.c.h.b16 %v350
        %v402 = vunpack.c.l.b16 %v351
        %v403 = vunpack.c.h.b16 %v351
        %v404 = vunpack.c.l.b16 %v352
        %v405 = vunpack.c.h.b16 %v352
        %v406 = vunpack.c.l.b16 %v353
        %v407 = vunpack.c.h.b16 %v353
        %v408 = vunpack.c.l.b16 %v354
        %v409 = vunpack.c.h.b16 %v354
        %v410 = vunpack.c.l.b16 %v355
        %v411 = vunpack.c.h.b16 %v355
        %v412 = vunpack.c.l.b16 %v356
        %v413 = vunpack.c.h.b16 %v356
        %v414 = vunpack.c.l.b16 %v357
        %v415 = vunpack.c.h.b16 %v357
        %v416 = vunpack.c.l.b16 %v358
        %v417 = vunpack.c.h.b16 %v358
        %v418 = vunpack.c.l.b16 %v359
        %v419 = vunpack.c.h.b16 %v359
        %v420 = vpack.c.b16 %v390, %v388
        %v421 = vpack.c.b16 %v391, %v389
        %v422 = vpack.c.b16 %v394, %v392
        %v423 = vpack.c.b16 %v395, %v393
        %v424 = vpack.c.b16 %v398, %v396
        %v425 = vpack.c.b16 %v399, %v397
        %v426 = vpack.c.b16 %v402, %v400
        %v427 = vpack.c.b16 %v403, %v401
        %v428 = vpack.c.b16 %v406, %v404
        %v429 = vpack.c.b16 %v407, %v405
        %v430 = vpack.c.b16 %v410, %v408
        %v431 = vpack.c.b16 %v411, %v409
        %v432 = vpack.c.b16 %v414, %v412
        %v433 = vpack.c.b16 %v415, %v413
        %v434 = vpack.c.b16 %v418, %v416
        %v435 = vpack.c.b16 %v419, %v417
        %452 = vmatprep.subr.bf16.mxu0 %v421
        %453 = vmatpush1.bf16.msra.mxu0 %v420
        %454 = vmatprep.subr.bf16.mxu0 %v423
        %455 = vmatpush1.bf16.msra.mxu0 %v422
        %456 = vmatprep.subr.bf16.mxu0 %v425
        %457 = vmatpush1.bf16.msra.mxu0 %v424
        %458 = vmatprep.subr.bf16.mxu0 %v427
        %459 = vmatpush1.bf16.msra.mxu0 %v426
        %460 = vmatprep.subr.bf16.mxu0 %v429
        %461 = vmatpush1.bf16.msra.mxu0 %v428
        %462 = vmatprep.subr.bf16.mxu0 %v431
        %463 = vmatpush1.bf16.msra.mxu0 %v430
        %464 = vmatprep.subr.bf16.mxu0 %v433
        %465 = vmatpush1.bf16.msra.mxu0 %v432
        %466 = vmatprep.subr.bf16.mxu0 %v435
        %467 = vmatpush1.bf16.msra.mxu0 %v434
        %468 = vmatprep.subr.bf16.mxu0 0
        %469 = vmatpush1.bf16.msra.mxu0 0
        %470 = vmatprep.subr.bf16.mxu0 0
        %471 = vmatpush1.bf16.msra.mxu0 0
        %472 = vmatprep.subr.bf16.mxu0 0
        %473 = vmatpush1.bf16.msra.mxu0 0
        %474 = vmatprep.subr.bf16.mxu0 0
        %475 = vmatpush1.bf16.msra.mxu0 0
        %476 = vmatprep.subr.bf16.mxu0 0
        %477 = vmatpush1.bf16.msra.mxu0 0
        %478 = vmatprep.subr.bf16.mxu0 0
        %479 = vmatpush1.bf16.msra.mxu0 0
        %480 = vmatprep.subr.bf16.mxu0 0
        %481 = vmatpush1.bf16.msra.mxu0 0
        %482 = vmatprep.subr.bf16.mxu0 0
        %483 = vmatpush1.bf16.msra.mxu0 0
        %484 = vmatprep.mubr.bf16.mxu0 0
        %485 = vmatmul.mubr.bf16.gmra.mrb[0].mxu0 %v312
        %v486 = vpop.f32.mrb[0].mxu0
        %v487 = vadd.f32 %v365, %v486
        %v488 = vpop.f32.mrb[0].mxu0
        %v489 = vadd.f32 %v369, %v488
        %v490 = vpop.f32.mrb[0].mxu0
        %v491 = vadd.f32 %v365, %v490
        %v492 = vpop.f32.mrb[0].mxu0
        %v493 = vadd.f32 %v369, %v492
        %494 = vmatprep.mubr.bf16.mxu0 0
        %495 = vmatmul.mubr.bf16.gmra.mrb[0].mxu0 %v313
        %v496 = vpop.f32.mrb[0].mxu0
        %v497 = vadd.f32 %v365, %v496
        %v498 = vpop.f32.mrb[0].mxu0
        %v499 = vadd.f32 %v369, %v498
        %v500 = vpop.f32.mrb[0].mxu0
        %v501 = vadd.f32 %v365, %v500
        %v502 = vpop.f32.mrb[0].mxu0
        %v503 = vadd.f32 %v369, %v502
        %504 = vmatprep.mubr.bf16.mxu0 0
        %505 = vmatmul.mubr.bf16.gmra.mrb[0].mxu0 %v314
        %v506 = vpop.f32.mrb[0].mxu0
        %v507 = vadd.f32 %v365, %v506
        %v508 = vpop.f32.mrb[0].mxu0
        %v509 = vadd.f32 %v369, %v508
        %v510 = vpop.f32.mrb[0].mxu0
        %v511 = vadd.f32 %v365, %v510
        %v512 = vpop.f32.mrb[0].mxu0
        %v513 = vadd.f32 %v369, %v512
        %514 = vmatprep.mubr.bf16.mxu0 0
        %515 = vmatmul.mubr.bf16.gmra.mrb[0].mxu0 %v315
        %v516 = vpop.f32.mrb[0].mxu0
        %v517 = vadd.f32 %v365, %v516
        %v518 = vpop.f32.mrb[0].mxu0
        %v519 = vadd.f32 %v369, %v518
        %v520 = vpop.f32.mrb[0].mxu0
        %v521 = vadd.f32 %v365, %v520
        %v522 = vpop.f32.mrb[0].mxu0
        %v523 = vadd.f32 %v369, %v522
        %524 = vmatprep.mubr.bf16.mxu0 0
        %525 = vmatmul.mubr.bf16.gmra.mrb[0].mxu0 %v316
        %v526 = vpop.f32.mrb[0].mxu0
        %v527 = vadd.f32 %v365, %v526
        %v528 = vpop.f32.mrb[0].mxu0
        %v529 = vadd.f32 %v369, %v528
        %v530 = vpop.f32.mrb[0].mxu0
        %v531 = vadd.f32 %v365, %v530
        %v532 = vpop.f32.mrb[0].mxu0
        %v533 = vadd.f32 %v369, %v532
        %534 = vmatprep.mubr.bf16.mxu0 0
        %535 = vmatmul.mubr.bf16.gmra.mrb[0].mxu0 %v317
        %v536 = vpop.f32.mrb[0].mxu0
        %v537 = vadd.f32 %v365, %v536
        %v538 = vpop.f32.mrb[0].mxu0
        %v539 = vadd.f32 %v369, %v538
        %v540 = vpop.f32.mrb[0].mxu0
        %v541 = vadd.f32 %v365, %v540
        %v542 = vpop.f32.mrb[0].mxu0
        %v543 = vadd.f32 %v369, %v542
        %544 = vmatprep.mubr.bf16.mxu0 0
        %545 = vmatmul.mubr.bf16.gmra.mrb[0].mxu0 %v318
        %v546 = vpop.f32.mrb[0].mxu0
        %v547 = vadd.f32 %v365, %v546
        %v548 = vpop.f32.mrb[0].mxu0
        %v549 = vadd.f32 %v369, %v548
        %v550 = vpop.f32.mrb[0].mxu0
        %v551 = vadd.f32 %v365, %v550
        %v552 = vpop.f32.mrb[0].mxu0
        %v553 = vadd.f32 %v369, %v552
        %554 = vmatprep.mubr.bf16.mxu0 0
        %555 = vmatmul.mubr.bf16.gmra.mrb[0].mxu0 %v319
        %v556 = vpop.f32.mrb[0].mxu0
        %v557 = vadd.f32 %v365, %v556
        %v558 = vpop.f32.mrb[0].mxu0
        %v559 = vadd.f32 %v369, %v558
        %v560 = vpop.f32.mrb[0].mxu0
        %v561 = vadd.f32 %v365, %v560
        %v562 = vpop.f32.mrb[0].mxu0
        %v563 = vadd.f32 %v369, %v562
        %564 = vmatprep.mubr.bf16.mxu0 0
        %565 = vmatmul.mubr.bf16.gmra.mrb[0].mxu0 %v320
        %v566 = vpop.f32.mrb[0].mxu0
        %v567 = vadd.f32 %v365, %v566
        %v568 = vpop.f32.mrb[0].mxu0
        %v569 = vadd.f32 %v369, %v568
        %v570 = vpop.f32.mrb[0].mxu0
        %v571 = vadd.f32 %v365, %v570
        %v572 = vpop.f32.mrb[0].mxu0
        %v573 = vadd.f32 %v369, %v572
        %574 = vmatprep.mubr.bf16.mxu0 0
        %575 = vmatmul.mubr.bf16.gmra.mrb[0].mxu0 %v321
        %v576 = vpop.f32.mrb[0].mxu0
        %v577 = vadd.f32 %v365, %v576
        %v578 = vpop.f32.mrb[0].mxu0
        %v579 = vadd.f32 %v369, %v578
        %v580 = vpop.f32.mrb[0].mxu0
        %v581 = vadd.f32 %v365, %v580
        %v582 = vpop.f32.mrb[0].mxu0
        %v583 = vadd.f32 %v369, %v582
        %584 = vmatprep.mubr.bf16.mxu0 0
        %585 = vmatmul.mubr.bf16.gmra.mrb[0].mxu0 %v322
        %v586 = vpop.f32.mrb[0].mxu0
        %v587 = vadd.f32 %v365, %v586
        %v588 = vpop.f32.mrb[0].mxu0
        %v589 = vadd.f32 %v369, %v588
        %v590 = vpop.f32.mrb[0].mxu0
        %v591 = vadd.f32 %v365, %v590
        %v592 = vpop.f32.mrb[0].mxu0
        %v593 = vadd.f32 %v369, %v592
        %594 = vmatprep.mubr.bf16.mxu0 0
        %595 = vmatmul.mubr.bf16.gmra.mrb[0].mxu0 %v323
        %v596 = vpop.f32.mrb[0].mxu0
        %v597 = vadd.f32 %v365, %v596
        %v598 = vpop.f32.mrb[0].mxu0
        %v599 = vadd.f32 %v369, %v598
        %v600 = vpop.f32.mrb[0].mxu0
        %v601 = vadd.f32 %v365, %v600
        %v602 = vpop.f32.mrb[0].mxu0
        %v603 = vadd.f32 %v369, %v602
        %604 = vmatprep.mubr.bf16.mxu0 0
        %605 = vmatmul.mubr.bf16.gmra.mrb[0].mxu0 %v324
        %v606 = vpop.f32.mrb[0].mxu0
        %v607 = vadd.f32 %v365, %v606
        %v608 = vpop.f32.mrb[0].mxu0
        %v609 = vadd.f32 %v369, %v608
        %v610 = vpop.f32.mrb[0].mxu0
        %v611 = vadd.f32 %v365, %v610
        %v612 = vpop.f32.mrb[0].mxu0
        %v613 = vadd.f32 %v369, %v612
        %614 = vmatprep.mubr.bf16.mxu0 0
        %615 = vmatmul.mubr.bf16.gmra.mrb[0].mxu0 %v325
        %v616 = vpop.f32.mrb[0].mxu0
        %v617 = vadd.f32 %v365, %v616
        %v618 = vpop.f32.mrb[0].mxu0
        %v619 = vadd.f32 %v369, %v618
        %v620 = vpop.f32.mrb[0].mxu0
        %v621 = vadd.f32 %v365, %v620
        %v622 = vpop.f32.mrb[0].mxu0
        %v623 = vadd.f32 %v369, %v622
        %624 = vmatprep.mubr.bf16.mxu0 0
        %625 = vmatmul.mubr.bf16.gmra.mrb[0].mxu0 %v326
        %v626 = vpop.f32.mrb[0].mxu0
        %v627 = vadd.f32 %v365, %v626
        %v628 = vpop.f32.mrb[0].mxu0
        %v629 = vadd.f32 %v369, %v628
        %v630 = vpop.f32.mrb[0].mxu0
        %v631 = vadd.f32 %v365, %v630
        %v632 = vpop.f32.mrb[0].mxu0
        %v633 = vadd.f32 %v369, %v632
        %634 = vmatprep.mubr.bf16.mxu0 0
        %635 = vmatmul.mubr.bf16.gmra.mrb[0].mxu0 %v327
        %v636 = vpop.f32.mrb[0].mxu0
        %v637 = vadd.f32 %v365, %v636
        %v638 = vpop.f32.mrb[0].mxu0
        %v639 = vadd.f32 %v369, %v638
        %v640 = vpop.f32.mrb[0].mxu0
        %v641 = vadd.f32 %v365, %v640
        %v642 = vpop.f32.mrb[0].mxu0
        %v643 = vadd.f32 %v369, %v642
        %644 = vmatprep.mubr.bf16.mxu0 0
        %645 = vmatmul.mubr.bf16.gmra.mrb[0].mxu0 %v328
        %v646 = vpop.f32.mrb[0].mxu0
        %v647 = vadd.f32 %v365, %v646
        %v648 = vpop.f32.mrb[0].mxu0
        %v649 = vadd.f32 %v369, %v648
        %v650 = vpop.f32.mrb[0].mxu0
        %v651 = vadd.f32 %v365, %v650
        %v652 = vpop.f32.mrb[0].mxu0
        %v653 = vadd.f32 %v369, %v652
        %654 = vmatprep.mubr.bf16.mxu0 0
        %655 = vmatmul.mubr.bf16.gmra.mrb[0].mxu0 %v329
        %v656 = vpop.f32.mrb[0].mxu0
        %v657 = vadd.f32 %v365, %v656
        %v658 = vpop.f32.mrb[0].mxu0
        %v659 = vadd.f32 %v369, %v658
        %v660 = vpop.f32.mrb[0].mxu0
        %v661 = vadd.f32 %v365, %v660
        %v662 = vpop.f32.mrb[0].mxu0
        %v663 = vadd.f32 %v369, %v662
        %664 = vmatprep.mubr.bf16.mxu0 0
        %665 = vmatmul.mubr.bf16.gmra.mrb[0].mxu0 %v330
        %v666 = vpop.f32.mrb[0].mxu0
        %v667 = vadd.f32 %v365, %v666
        %v668 = vpop.f32.mrb[0].mxu0
        %v669 = vadd.f32 %v369, %v668
        %v670 = vpop.f32.mrb[0].mxu0
        %v671 = vadd.f32 %v365, %v670
        %v672 = vpop.f32.mrb[0].mxu0
        %v673 = vadd.f32 %v369, %v672
        %674 = vmatprep.mubr.bf16.mxu0 0
        %675 = vmatmul.mubr.bf16.gmra.mrb[0].mxu0 %v331
        %v676 = vpop.f32.mrb[0].mxu0
        %v677 = vadd.f32 %v365, %v676
        %v678 = vpop.f32.mrb[0].mxu0
        %v679 = vadd.f32 %v369, %v678
        %v680 = vpop.f32.mrb[0].mxu0
        %v681 = vadd.f32 %v365, %v680
        %v682 = vpop.f32.mrb[0].mxu0
        %v683 = vadd.f32 %v369, %v682
        %684 = vmatprep.mubr.bf16.mxu0 0
        %685 = vmatmul.mubr.bf16.gmra.mrb[0].mxu0 %v332
        %v686 = vpop.f32.mrb[0].mxu0
        %v687 = vadd.f32 %v365, %v686
        %v688 = vpop.f32.mrb[0].mxu0
        %v689 = vadd.f32 %v369, %v688
        %v690 = vpop.f32.mrb[0].mxu0
        %v691 = vadd.f32 %v365, %v690
        %v692 = vpop.f32.mrb[0].mxu0
        %v693 = vadd.f32 %v369, %v692
        %694 = vmatprep.mubr.bf16.mxu0 0
        %695 = vmatmul.mubr.bf16.gmra.mrb[0].mxu0 %v333
        %v696 = vpop.f32.mrb[0].mxu0
        %v697 = vadd.f32 %v365, %v696
        %v698 = vpop.f32.mrb[0].mxu0
        %v699 = vadd.f32 %v369, %v698
        %v700 = vpop.f32.mrb[0].mxu0
        %v701 = vadd.f32 %v365, %v700
        %v702 = vpop.f32.mrb[0].mxu0
        %v703 = vadd.f32 %v369, %v702
        %704 = vmatprep.mubr.bf16.mxu0 0
        %705 = vmatmul.mubr.bf16.gmra.mrb[0].mxu0 %v334
        %v706 = vpop.f32.mrb[0].mxu0
        %v707 = vadd.f32 %v365, %v706
        %v708 = vpop.f32.mrb[0].mxu0
        %v709 = vadd.f32 %v369, %v708
        %v710 = vpop.f32.mrb[0].mxu0
        %v711 = vadd.f32 %v365, %v710
        %v712 = vpop.f32.mrb[0].mxu0
        %v713 = vadd.f32 %v369, %v712
        %714 = vmatprep.mubr.bf16.mxu0 0
        %715 = vmatmul.mubr.bf16.gmra.mrb[0].mxu0 %v335
        %v716 = vpop.f32.mrb[0].mxu0
        %v717 = vadd.f32 %v365, %v716
        %v718 = vpop.f32.mrb[0].mxu0
        %v719 = vadd.f32 %v369, %v718
        %v720 = vpop.f32.mrb[0].mxu0
        %v721 = vadd.f32 %v365, %v720
        %v722 = vpop.f32.mrb[0].mxu0
        %v723 = vadd.f32 %v369, %v722
        %724 = vmatprep.mubr.bf16.mxu0 0
        %725 = vmatmul.mubr.bf16.gmra.mrb[0].mxu0 %v336
        %v726 = vpop.f32.mrb[0].mxu0
        %v727 = vadd.f32 %v365, %v726
        %v728 = vpop.f32.mrb[0].mxu0
        %v729 = vadd.f32 %v369, %v728
        %v730 = vpop.f32.mrb[0].mxu0
        %v731 = vadd.f32 %v365, %v730
        %v732 = vpop.f32.mrb[0].mxu0
        %v733 = vadd.f32 %v369, %v732
        %734 = vmatprep.mubr.bf16.mxu0 0
        %735 = vmatmul.mubr.bf16.gmra.mrb[0].mxu0 %v337
        %v736 = vpop.f32.mrb[0].mxu0
        %v737 = vadd.f32 %v365, %v736
        %v738 = vpop.f32.mrb[0].mxu0
        %v739 = vadd.f32 %v369, %v738
        %v740 = vpop.f32.mrb[0].mxu0
        %v741 = vadd.f32 %v365, %v740
        %v742 = vpop.f32.mrb[0].mxu0
        %v743 = vadd.f32 %v369, %v742
        %744 = vmatprep.mubr.bf16.mxu0 0
        %745 = vmatmul.mubr.bf16.gmra.mrb[0].mxu0 %v338
        %v746 = vpop.f32.mrb[0].mxu0
        %v747 = vadd.f32 %v365, %v746
        %v748 = vpop.f32.mrb[0].mxu0
        %v749 = vadd.f32 %v369, %v748
        %v750 = vpop.f32.mrb[0].mxu0
        %v751 = vadd.f32 %v365, %v750
        %v752 = vpop.f32.mrb[0].mxu0
        %v753 = vadd.f32 %v369, %v752
        %754 = vmatprep.mubr.bf16.mxu0 0
        %755 = vmatmul.mubr.bf16.gmra.mrb[0].mxu0 %v339
        %v756 = vpop.f32.mrb[0].mxu0
        %v757 = vadd.f32 %v365, %v756
        %v758 = vpop.f32.mrb[0].mxu0
        %v759 = vadd.f32 %v369, %v758
        %v760 = vpop.f32.mrb[0].mxu0
        %v761 = vadd.f32 %v365, %v760
        %v762 = vpop.f32.mrb[0].mxu0
        %v763 = vadd.f32 %v369, %v762
        %764 = vmatprep.mubr.bf16.mxu0 0
        %765 = vmatmul.mubr.bf16.gmra.mrb[0].mxu0 %v340
        %v766 = vpop.f32.mrb[0].mxu0
        %v767 = vadd.f32 %v365, %v766
        %v768 = vpop.f32.mrb[0].mxu0
        %v769 = vadd.f32 %v369, %v768
        %v770 = vpop.f32.mrb[0].mxu0
        %v771 = vadd.f32 %v365, %v770
        %v772 = vpop.f32.mrb[0].mxu0
        %v773 = vadd.f32 %v369, %v772
        %774 = vmatprep.mubr.bf16.mxu0 0
        %775 = vmatmul.mubr.bf16.gmra.mrb[0].mxu0 %v341
        %v776 = vpop.f32.mrb[0].mxu0
        %v777 = vadd.f32 %v365, %v776
        %v778 = vpop.f32.mrb[0].mxu0
        %v779 = vadd.f32 %v369, %v778
        %v780 = vpop.f32.mrb[0].mxu0
        %v781 = vadd.f32 %v365, %v780
        %v782 = vpop.f32.mrb[0].mxu0
        %v783 = vadd.f32 %v369, %v782
        %784 = vmatprep.mubr.bf16.mxu0 0
        %785 = vmatmul.mubr.bf16.gmra.mrb[0].mxu0 %v342
        %v786 = vpop.f32.mrb[0].mxu0
        %v787 = vadd.f32 %v365, %v786
        %v788 = vpop.f32.mrb[0].mxu0
        %v789 = vadd.f32 %v369, %v788
        %v790 = vpop.f32.mrb[0].mxu0
        %v791 = vadd.f32 %v365, %v790
        %v792 = vpop.f32.mrb[0].mxu0
        %v793 = vadd.f32 %v369, %v792
        %794 = vmatprep.mubr.bf16.mxu0 0
        %795 = vmatmul.mubr.bf16.gmra.mrb[0].mxu0 %v343
        %v796 = vpop.f32.mrb[0].mxu0
        %v797 = vadd.f32 %v365, %v796
        %v798 = vpop.f32.mrb[0].mxu0
        %v799 = vadd.f32 %v369, %v798
        %v800 = vpop.f32.mrb[0].mxu0
        %v801 = vadd.f32 %v365, %v800
        %v802 = vpop.f32.mrb[0].mxu0
        %v803 = vadd.f32 %v369, %v802
        %804 = vdwg.mxu0
        %v805 = vmax.f32 %v487, 0.0
        %v806 = vmax.f32 %v489, 0.0
        %v807 = vmax.f32 %v491, 0.0
        %v808 = vmax.f32 %v493, 0.0
        %v809 = vmax.f32 %v497, 0.0
        %v810 = vmax.f32 %v499, 0.0
        %v811 = vmax.f32 %v501, 0.0
        %v812 = vmax.f32 %v503, 0.0
        %v813 = vmax.f32 %v507, 0.0
        %v814 = vmax.f32 %v509, 0.0
        %v815 = vmax.f32 %v511, 0.0
        %v816 = vmax.f32 %v513, 0.0
        %v817 = vmax.f32 %v517, 0.0
        %v818 = vmax.f32 %v519, 0.0
        %v819 = vmax.f32 %v521, 0.0
        %v820 = vmax.f32 %v523, 0.0
        %v821 = vmax.f32 %v527, 0.0
        %v822 = vmax.f32 %v529, 0.0
        %v823 = vmax.f32 %v531, 0.0
        %v824 = vmax.f32 %v533, 0.0
        %v825 = vmax.f32 %v537, 0.0
        %v826 = vmax.f32 %v539, 0.0
        %v827 = vmax.f32 %v541, 0.0
        %v828 = vmax.f32 %v543, 0.0
        %v829 = vmax.f32 %v547, 0.0
        %v830 = vmax.f32 %v549, 0.0
        %v831 = vmax.f32 %v551, 0.0
        %v832 = vmax.f32 %v553, 0.0
        %v833 = vmax.f32 %v557, 0.0
        %v834 = vmax.f32 %v559, 0.0
        %v835 = vmax.f32 %v561, 0.0
        %v836 = vmax.f32 %v563, 0.0
        %v837 = vmax.f32 %v567, 0.0
        %v838 = vmax.f32 %v569, 0.0
        %v839 = vmax.f32 %v571, 0.0
        %v840 = vmax.f32 %v573, 0.0
        %v841 = vmax.f32 %v577, 0.0
        %v842 = vmax.f32 %v579, 0.0
        %v843 = vmax.f32 %v581, 0.0
        %v844 = vmax.f32 %v583, 0.0
        %v845 = vmax.f32 %v587, 0.0
        %v846 = vmax.f32 %v589, 0.0
        %v847 = vmax.f32 %v591, 0.0
        %v848 = vmax.f32 %v593, 0.0
        %v849 = vmax.f32 %v597, 0.0
        %v850 = vmax.f32 %v599, 0.0
        %v851 = vmax.f32 %v601, 0.0
        %v852 = vmax.f32 %v603, 0.0
        %v853 = vmax.f32 %v607, 0.0
        %v854 = vmax.f32 %v609, 0.0
        %v855 = vmax.f32 %v611, 0.0
        %v856 = vmax.f32 %v613, 0.0
        %v857 = vmax.f32 %v617, 0.0
        %v858 = vmax.f32 %v619, 0.0
        %v859 = vmax.f32 %v621, 0.0
        %v860 = vmax.f32 %v623, 0.0
        %v861 = vmax.f32 %v627, 0.0
        %v862 = vmax.f32 %v629, 0.0
        %v863 = vmax.f32 %v631, 0.0
        %v864 = vmax.f32 %v633, 0.0
        %v865 = vmax.f32 %v637, 0.0
        %v866 = vmax.f32 %v639, 0.0
        %v867 = vmax.f32 %v641, 0.0
        %v868 = vmax.f32 %v643, 0.0
        %v869 = vmax.f32 %v647, 0.0
        %v870 = vmax.f32 %v649, 0.0
        %v871 = vmax.f32 %v651, 0.0
        %v872 = vmax.f32 %v653, 0.0
        %v873 = vmax.f32 %v657, 0.0
        %v874 = vmax.f32 %v659, 0.0
        %v875 = vmax.f32 %v661, 0.0
        %v876 = vmax.f32 %v663, 0.0
        %v877 = vmax.f32 %v667, 0.0
        %v878 = vmax.f32 %v669, 0.0
        %v879 = vmax.f32 %v671, 0.0
        %v880 = vmax.f32 %v673, 0.0
        %v881 = vmax.f32 %v677, 0.0
        %v882 = vmax.f32 %v679, 0.0
        %v883 = vmax.f32 %v681, 0.0
        %v884 = vmax.f32 %v683, 0.0
        %v885 = vmax.f32 %v687, 0.0
        %v886 = vmax.f32 %v689, 0.0
        %v887 = vmax.f32 %v691, 0.0
        %v888 = vmax.f32 %v693, 0.0
        %v889 = vmax.f32 %v697, 0.0
        %v890 = vmax.f32 %v699, 0.0
        %v891 = vmax.f32 %v701, 0.0
        %v892 = vmax.f32 %v703, 0.0
        %v893 = vmax.f32 %v707, 0.0
        %v894 = vmax.f32 %v709, 0.0
        %v895 = vmax.f32 %v711, 0.0
        %v896 = vmax.f32 %v713, 0.0
        %v897 = vmax.f32 %v717, 0.0
        %v898 = vmax.f32 %v719, 0.0
        %v899 = vmax.f32 %v721, 0.0
        %v900 = vmax.f32 %v723, 0.0
        %v901 = vmax.f32 %v727, 0.0
        %v902 = vmax.f32 %v729, 0.0
        %v903 = vmax.f32 %v731, 0.0
        %v904 = vmax.f32 %v733, 0.0
        %v905 = vmax.f32 %v737, 0.0
        %v906 = vmax.f32 %v739, 0.0
        %v907 = vmax.f32 %v741, 0.0
        %v908 = vmax.f32 %v743, 0.0
        %v909 = vmax.f32 %v747, 0.0
        %v910 = vmax.f32 %v749, 0.0
        %v911 = vmax.f32 %v751, 0.0
        %v912 = vmax.f32 %v753, 0.0
        %v913 = vmax.f32 %v757, 0.0
        %v914 = vmax.f32 %v759, 0.0
        %v915 = vmax.f32 %v761, 0.0
        %v916 = vmax.f32 %v763, 0.0
        %v917 = vmax.f32 %v767, 0.0
        %v918 = vmax.f32 %v769, 0.0
        %v919 = vmax.f32 %v771, 0.0
        %v920 = vmax.f32 %v773, 0.0
        %v921 = vmax.f32 %v777, 0.0
        %v922 = vmax.f32 %v779, 0.0
        %v923 = vmax.f32 %v781, 0.0
        %v924 = vmax.f32 %v783, 0.0
        %v925 = vmax.f32 %v787, 0.0
        %v926 = vmax.f32 %v789, 0.0
        %v927 = vmax.f32 %v791, 0.0
        %v928 = vmax.f32 %v793, 0.0
        %v929 = vmax.f32 %v797, 0.0
        %v930 = vmax.f32 %v799, 0.0
        %v931 = vmax.f32 %v801, 0.0
        %v932 = vmax.f32 %v803, 0.0
        %v933 = vpack.c.bf16 %v807, %v805
        %v934 = vpack.c.bf16 %v808, %v806
        %v935 = vpack.c.bf16 %v811, %v809
        %v936 = vpack.c.bf16 %v812, %v810
        %v937 = vpack.c.bf16 %v815, %v813
        %v938 = vpack.c.bf16 %v816, %v814
        %v939 = vpack.c.bf16 %v819, %v817
        %v940 = vpack.c.bf16 %v820, %v818
        %v941 = vpack.c.bf16 %v823, %v821
        %v942 = vpack.c.bf16 %v824, %v822
        %v943 = vpack.c.bf16 %v827, %v825
        %v944 = vpack.c.bf16 %v828, %v826
        %v945 = vpack.c.bf16 %v831, %v829
        %v946 = vpack.c.bf16 %v832, %v830
        %v947 = vpack.c.bf16 %v835, %v833
        %v948 = vpack.c.bf16 %v836, %v834
        %v949 = vpack.c.bf16 %v839, %v837
        %v950 = vpack.c.bf16 %v840, %v838
        %v951 = vpack.c.bf16 %v843, %v841
        %v952 = vpack.c.bf16 %v844, %v842
        %v953 = vpack.c.bf16 %v847, %v845
        %v954 = vpack.c.bf16 %v848, %v846
        %v955 = vpack.c.bf16 %v851, %v849
        %v956 = vpack.c.bf16 %v852, %v850
        %v957 = vpack.c.bf16 %v855, %v853
        %v958 = vpack.c.bf16 %v856, %v854
        %v959 = vpack.c.bf16 %v859, %v857
        %v960 = vpack.c.bf16 %v860, %v858
        %v961 = vpack.c.bf16 %v863, %v861
        %v962 = vpack.c.bf16 %v864, %v862
        %v963 = vpack.c.bf16 %v867, %v865
        %v964 = vpack.c.bf16 %v868, %v866
        %v965 = vpack.c.bf16 %v871, %v869
        %v966 = vpack.c.bf16 %v872, %v870
        %v967 = vpack.c.bf16 %v875, %v873
        %v968 = vpack.c.bf16 %v876, %v874
        %v969 = vpack.c.bf16 %v879, %v877
        %v970 = vpack.c.bf16 %v880, %v878
        %v971 = vpack.c.bf16 %v883, %v881
        %v972 = vpack.c.bf16 %v884, %v882
        %v973 = vpack.c.bf16 %v887, %v885
        %v974 = vpack.c.bf16 %v888, %v886
        %v975 = vpack.c.bf16 %v891, %v889
        %v976 = vpack.c.bf16 %v892, %v890
        %v977 = vpack.c.bf16 %v895, %v893
        %v978 = vpack.c.bf16 %v896, %v894
        %v979 = vpack.c.bf16 %v899, %v897
        %v980 = vpack.c.bf16 %v900, %v898
        %v981 = vpack.c.bf16 %v903, %v901
        %v982 = vpack.c.bf16 %v904, %v902
        %v983 = vpack.c.bf16 %v907, %v905
        %v984 = vpack.c.bf16 %v908, %v906
        %v985 = vpack.c.bf16 %v911, %v909
        %v986 = vpack.c.bf16 %v912, %v910
        %v987 = vpack.c.bf16 %v915, %v913
        %v988 = vpack.c.bf16 %v916, %v914
        %v989 = vpack.c.bf16 %v919, %v917
        %v990 = vpack.c.bf16 %v920, %v918
        %v991 = vpack.c.bf16 %v923, %v921
        %v992 = vpack.c.bf16 %v924, %v922
        %v993 = vpack.c.bf16 %v927, %v925
        %v994 = vpack.c.bf16 %v928, %v926
        %v995 = vpack.c.bf16 %v931, %v929
        %v996 = vpack.c.bf16 %v932, %v930
        %v997 = vld [vmem:[%s3] sm:$0xf]
        %v998 = vld [vmem:[%s3 + $0x4] sm:$0xf]
        %v999 = vld [vmem:[%s3 + $0x8] sm:$0xf]
        %v1000 = vld [vmem:[%s3 + $0xc] sm:$0xf]
        %v1001 = vld [vmem:[%s3 + $0x10] sm:$0xf]
        %v1002 = vld [vmem:[%s3 + $0x14] sm:$0xf]
        %v1003 = vld [vmem:[%s3 + $0x18] sm:$0xf]
        %v1004 = vld [vmem:[%s3 + $0x1c] sm:$0xf]
        %v1005 = vld [vmem:[%s3 + $0x20] sm:$0xf]
        %v1006 = vld [vmem:[%s3 + $0x24] sm:$0xf]
        %v1007 = vld [vmem:[%s3 + $0x28] sm:$0xf]
        %v1008 = vld [vmem:[%s3 + $0x2c] sm:$0xf]
        %v1009 = vld [vmem:[%s3 + $0x30] sm:$0xf]
        %v1010 = vld [vmem:[%s3 + $0x34] sm:$0xf]
        %v1011 = vld [vmem:[%s3 + $0x38] sm:$0xf]
        %v1012 = vld [vmem:[%s3 + $0x3c] sm:$0xf]
        %v1013 = vld [vmem:[%s3 + $0x40] sm:$0xf]
        %v1014 = vld [vmem:[%s3 + $0x44] sm:$0xf]
        %v1015 = vld [vmem:[%s3 + $0x48] sm:$0xf]
        %v1016 = vld [vmem:[%s3 + $0x4c] sm:$0xf]
        %v1017 = vld [vmem:[%s3 + $0x50] sm:$0xf]
        %v1018 = vld [vmem:[%s3 + $0x54] sm:$0xf]
        %v1019 = vld [vmem:[%s3 + $0x58] sm:$0xf]
        %v1020 = vld [vmem:[%s3 + $0x5c] sm:$0xf]
        %v1021 = vld [vmem:[%s3 + $0x60] sm:$0xf]
        %v1022 = vld [vmem:[%s3 + $0x64] sm:$0xf]
        %v1023 = vld [vmem:[%s3 + $0x68] sm:$0xf]
        %v1024 = vld [vmem:[%s3 + $0x6c] sm:$0xf]
        %v1025 = vld [vmem:[%s3 + $0x70] sm:$0xf]
        %v1026 = vld [vmem:[%s3 + $0x74] sm:$0xf]
        %v1027 = vld [vmem:[%s3 + $0x78] sm:$0xf]
        %v1028 = vld [vmem:[%s3 + $0x7c] sm:$0xf]
        %v1029 = vld [vmem:[%s4] sm:$0x1]
        %v1031 = vlaneseq
        %v1032 = vshrl.u32 %v1031, 7
        %v1033 = vsub.s32 0, %v1032
        %v1034 = vrot.slane %v1029, %v1033
        %v1068 = vunpack.c.l.b16 %v997
        %v1069 = vunpack.c.l.b16 %v998
        %v1070 = vunpack.c.l.b16 %v999
        %v1071 = vunpack.c.l.b16 %v1000
        %v1072 = vunpack.c.l.b16 %v1001
        %v1073 = vunpack.c.l.b16 %v1002
        %v1074 = vunpack.c.l.b16 %v1003
        %v1075 = vunpack.c.l.b16 %v1004
        %v1076 = vunpack.c.l.b16 %v1005
        %v1077 = vunpack.c.l.b16 %v1006
        %v1078 = vunpack.c.l.b16 %v1007
        %v1079 = vunpack.c.l.b16 %v1008
        %v1080 = vunpack.c.l.b16 %v1009
        %v1081 = vunpack.c.l.b16 %v1010
        %v1082 = vunpack.c.l.b16 %v1011
        %v1083 = vunpack.c.l.b16 %v1012
        %v1084 = vunpack.c.l.b16 %v1013
        %v1085 = vunpack.c.l.b16 %v1014
        %v1086 = vunpack.c.l.b16 %v1015
        %v1087 = vunpack.c.l.b16 %v1016
        %v1088 = vunpack.c.l.b16 %v1017
        %v1089 = vunpack.c.l.b16 %v1018
        %v1090 = vunpack.c.l.b16 %v1019
        %v1091 = vunpack.c.l.b16 %v1020
        %v1092 = vunpack.c.l.b16 %v1021
        %v1093 = vunpack.c.l.b16 %v1022
        %v1094 = vunpack.c.l.b16 %v1023
        %v1095 = vunpack.c.l.b16 %v1024
        %v1096 = vunpack.c.l.b16 %v1025
        %v1097 = vunpack.c.l.b16 %v1026
        %v1098 = vunpack.c.l.b16 %v1027
        %v1099 = vunpack.c.l.b16 %v1028
        %v1100 = vpack.c.b16 %v1069, %v1068
        %v1101 = vpack.c.b16 %v1071, %v1070
        %v1102 = vpack.c.b16 %v1073, %v1072
        %v1103 = vpack.c.b16 %v1075, %v1074
        %v1104 = vpack.c.b16 %v1077, %v1076
        %v1105 = vpack.c.b16 %v1079, %v1078
        %v1106 = vpack.c.b16 %v1081, %v1080
        %v1107 = vpack.c.b16 %v1083, %v1082
        %v1108 = vpack.c.b16 %v1085, %v1084
        %v1109 = vpack.c.b16 %v1087, %v1086
        %v1110 = vpack.c.b16 %v1089, %v1088
        %v1111 = vpack.c.b16 %v1091, %v1090
        %v1112 = vpack.c.b16 %v1093, %v1092
        %v1113 = vpack.c.b16 %v1095, %v1094
        %v1114 = vpack.c.b16 %v1097, %v1096
        %v1115 = vpack.c.b16 %v1099, %v1098
        %1132 = vmatprep.subr.bf16.mxu0 0
        %1133 = vmatpush1.bf16.msra.mxu0 %v1100
        %1134 = vmatprep.subr.bf16.mxu0 0
        %1135 = vmatpush1.bf16.msra.mxu0 %v1101
        %1136 = vmatprep.subr.bf16.mxu0 0
        %1137 = vmatpush1.bf16.msra.mxu0 %v1102
        %1138 = vmatprep.subr.bf16.mxu0 0
        %1139 = vmatpush1.bf16.msra.mxu0 %v1103
        %1140 = vmatprep.subr.bf16.mxu0 0
        %1141 = vmatpush1.bf16.msra.mxu0 %v1104
        %1142 = vmatprep.subr.bf16.mxu0 0
        %1143 = vmatpush1.bf16.msra.mxu0 %v1105
        %1144 = vmatprep.subr.bf16.mxu0 0
        %1145 = vmatpush1.bf16.msra.mxu0 %v1106
        %1146 = vmatprep.subr.bf16.mxu0 0
        %1147 = vmatpush1.bf16.msra.mxu0 %v1107
        %1148 = vmatprep.subr.bf16.mxu0 0
        %1149 = vmatpush1.bf16.msra.mxu0 %v1108
        %1150 = vmatprep.subr.bf16.mxu0 0
        %1151 = vmatpush1.bf16.msra.mxu0 %v1109
        %1152 = vmatprep.subr.bf16.mxu0 0
        %1153 = vmatpush1.bf16.msra.mxu0 %v1110
        %1154 = vmatprep.subr.bf16.mxu0 0
        %1155 = vmatpush1.bf16.msra.mxu0 %v1111
        %1156 = vmatprep.subr.bf16.mxu0 0
        %1157 = vmatpush1.bf16.msra.mxu0 %v1112
        %1158 = vmatprep.subr.bf16.mxu0 0
        %1159 = vmatpush1.bf16.msra.mxu0 %v1113
        %1160 = vmatprep.subr.bf16.mxu0 0
        %1161 = vmatpush1.bf16.msra.mxu0 %v1114
        %1162 = vmatprep.subr.bf16.mxu0 0
        %1163 = vmatpush1.bf16.msra.mxu0 %v1115
        %1164 = vmatprep.mubr.bf16.mxu0 %v934
        %1165 = vmatmul.mubr.bf16.gmra.mrb[0].mxu0 %v933
        %v1166 = vpop.f32.mrb[0].mxu0
        %v1167 = vadd.f32 %v1034, %v1166
        %v1168 = vpop.f32.mrb[0].mxu0
        %v1169 = vpop.f32.mrb[0].mxu0
        %v1170 = vadd.f32 %v1034, %v1169
        %v1171 = vpop.f32.mrb[0].mxu0
        %1172 = vmatprep.mubr.bf16.mxu0 %v936
        %1173 = vmatmul.mubr.bf16.gmra.mrb[0].mxu0 %v935
        %v1174 = vpop.f32.mrb[0].mxu0
        %v1175 = vadd.f32 %v1034, %v1174
        %v1176 = vpop.f32.mrb[0].mxu0
        %v1177 = vpop.f32.mrb[0].mxu0
        %v1178 = vadd.f32 %v1034, %v1177
        %v1179 = vpop.f32.mrb[0].mxu0
        %1180 = vmatprep.mubr.bf16.mxu0 %v938
        %1181 = vmatmul.mubr.bf16.gmra.mrb[0].mxu0 %v937
        %v1182 = vpop.f32.mrb[0].mxu0
        %v1183 = vadd.f32 %v1034, %v1182
        %v1184 = vpop.f32.mrb[0].mxu0
        %v1185 = vpop.f32.mrb[0].mxu0
        %v1186 = vadd.f32 %v1034, %v1185
        %v1187 = vpop.f32.mrb[0].mxu0
        %1188 = vmatprep.mubr.bf16.mxu0 %v940
        %1189 = vmatmul.mubr.bf16.gmra.mrb[0].mxu0 %v939
        %v1190 = vpop.f32.mrb[0].mxu0
        %v1191 = vadd.f32 %v1034, %v1190
        %v1192 = vpop.f32.mrb[0].mxu0
        %v1193 = vpop.f32.mrb[0].mxu0
        %v1194 = vadd.f32 %v1034, %v1193
        %v1195 = vpop.f32.mrb[0].mxu0
        %1196 = vmatprep.mubr.bf16.mxu0 %v942
        %1197 = vmatmul.mubr.bf16.gmra.mrb[0].mxu0 %v941
        %v1198 = vpop.f32.mrb[0].mxu0
        %v1199 = vadd.f32 %v1034, %v1198
        %v1200 = vpop.f32.mrb[0].mxu0
        %v1201 = vpop.f32.mrb[0].mxu0
        %v1202 = vadd.f32 %v1034, %v1201
        %v1203 = vpop.f32.mrb[0].mxu0
        %1204 = vmatprep.mubr.bf16.mxu0 %v944
        %1205 = vmatmul.mubr.bf16.gmra.mrb[0].mxu0 %v943
        %v1206 = vpop.f32.mrb[0].mxu0
        %v1207 = vadd.f32 %v1034, %v1206
        %v1208 = vpop.f32.mrb[0].mxu0
        %v1209 = vpop.f32.mrb[0].mxu0
        %v1210 = vadd.f32 %v1034, %v1209
        %v1211 = vpop.f32.mrb[0].mxu0
        %1212 = vmatprep.mubr.bf16.mxu0 %v946
        %1213 = vmatmul.mubr.bf16.gmra.mrb[0].mxu0 %v945
        %v1214 = vpop.f32.mrb[0].mxu0
        %v1215 = vadd.f32 %v1034, %v1214
        %v1216 = vpop.f32.mrb[0].mxu0
        %v1217 = vpop.f32.mrb[0].mxu0
        %v1218 = vadd.f32 %v1034, %v1217
        %v1219 = vpop.f32.mrb[0].mxu0
        %1220 = vmatprep.mubr.bf16.mxu0 %v948
        %1221 = vmatmul.mubr.bf16.gmra.mrb[0].mxu0 %v947
        %v1222 = vpop.f32.mrb[0].mxu0
        %v1223 = vadd.f32 %v1034, %v1222
        %v1224 = vpop.f32.mrb[0].mxu0
        %v1225 = vpop.f32.mrb[0].mxu0
        %v1226 = vadd.f32 %v1034, %v1225
        %v1227 = vpop.f32.mrb[0].mxu0
        %1228 = vmatprep.mubr.bf16.mxu0 %v950
        %1229 = vmatmul.mubr.bf16.gmra.mrb[0].mxu0 %v949
        %v1230 = vpop.f32.mrb[0].mxu0
        %v1231 = vadd.f32 %v1034, %v1230
        %v1232 = vpop.f32.mrb[0].mxu0
        %v1233 = vpop.f32.mrb[0].mxu0
        %v1234 = vadd.f32 %v1034, %v1233
        %v1235 = vpop.f32.mrb[0].mxu0
        %1236 = vmatprep.mubr.bf16.mxu0 %v952
        %1237 = vmatmul.mubr.bf16.gmra.mrb[0].mxu0 %v951
        %v1238 = vpop.f32.mrb[0].mxu0
        %v1239 = vadd.f32 %v1034, %v1238
        %v1240 = vpop.f32.mrb[0].mxu0
        %v1241 = vpop.f32.mrb[0].mxu0
        %v1242 = vadd.f32 %v1034, %v1241
        %v1243 = vpop.f32.mrb[0].mxu0
        %1244 = vmatprep.mubr.bf16.mxu0 %v954
        %1245 = vmatmul.mubr.bf16.gmra.mrb[0].mxu0 %v953
        %v1246 = vpop.f32.mrb[0].mxu0
        %v1247 = vadd.f32 %v1034, %v1246
        %v1248 = vpop.f32.mrb[0].mxu0
        %v1249 = vpop.f32.mrb[0].mxu0
        %v1250 = vadd.f32 %v1034, %v1249
        %v1251 = vpop.f32.mrb[0].mxu0
        %1252 = vmatprep.mubr.bf16.mxu0 %v956
        %1253 = vmatmul.mubr.bf16.gmra.mrb[0].mxu0 %v955
        %v1254 = vpop.f32.mrb[0].mxu0
        %v1255 = vadd.f32 %v1034, %v1254
        %v1256 = vpop.f32.mrb[0].mxu0
        %v1257 = vpop.f32.mrb[0].mxu0
        %v1258 = vadd.f32 %v1034, %v1257
        %v1259 = vpop.f32.mrb[0].mxu0
        %1260 = vmatprep.mubr.bf16.mxu0 %v958
        %1261 = vmatmul.mubr.bf16.gmra.mrb[0].mxu0 %v957
        %v1262 = vpop.f32.mrb[0].mxu0
        %v1263 = vadd.f32 %v1034, %v1262
        %v1264 = vpop.f32.mrb[0].mxu0
        %v1265 = vpop.f32.mrb[0].mxu0
        %v1266 = vadd.f32 %v1034, %v1265
        %v1267 = vpop.f32.mrb[0].mxu0
        %1268 = vmatprep.mubr.bf16.mxu0 %v960
        %1269 = vmatmul.mubr.bf16.gmra.mrb[0].mxu0 %v959
        %v1270 = vpop.f32.mrb[0].mxu0
        %v1271 = vadd.f32 %v1034, %v1270
        %v1272 = vpop.f32.mrb[0].mxu0
        %v1273 = vpop.f32.mrb[0].mxu0
        %v1274 = vadd.f32 %v1034, %v1273
        %v1275 = vpop.f32.mrb[0].mxu0
        %1276 = vmatprep.mubr.bf16.mxu0 %v962
        %1277 = vmatmul.mubr.bf16.gmra.mrb[0].mxu0 %v961
        %v1278 = vpop.f32.mrb[0].mxu0
        %v1279 = vadd.f32 %v1034, %v1278
        %v1280 = vpop.f32.mrb[0].mxu0
        %v1281 = vpop.f32.mrb[0].mxu0
        %v1282 = vadd.f32 %v1034, %v1281
        %v1283 = vpop.f32.mrb[0].mxu0
        %1284 = vmatprep.mubr.bf16.mxu0 %v964
        %1285 = vmatmul.mubr.bf16.gmra.mrb[0].mxu0 %v963
        %v1286 = vpop.f32.mrb[0].mxu0
        %v1287 = vadd.f32 %v1034, %v1286
        %v1288 = vpop.f32.mrb[0].mxu0
        %v1289 = vpop.f32.mrb[0].mxu0
        %v1290 = vadd.f32 %v1034, %v1289
        %v1291 = vpop.f32.mrb[0].mxu0
        %1292 = vmatprep.mubr.bf16.mxu0 %v966
        %1293 = vmatmul.mubr.bf16.gmra.mrb[0].mxu0 %v965
        %v1294 = vpop.f32.mrb[0].mxu0
        %v1295 = vadd.f32 %v1034, %v1294
        %v1296 = vpop.f32.mrb[0].mxu0
        %v1297 = vpop.f32.mrb[0].mxu0
        %v1298 = vadd.f32 %v1034, %v1297
        %v1299 = vpop.f32.mrb[0].mxu0
        %1300 = vmatprep.mubr.bf16.mxu0 %v968
        %1301 = vmatmul.mubr.bf16.gmra.mrb[0].mxu0 %v967
        %v1302 = vpop.f32.mrb[0].mxu0
        %v1303 = vadd.f32 %v1034, %v1302
        %v1304 = vpop.f32.mrb[0].mxu0
        %v1305 = vpop.f32.mrb[0].mxu0
        %v1306 = vadd.f32 %v1034, %v1305
        %v1307 = vpop.f32.mrb[0].mxu0
        %1308 = vmatprep.mubr.bf16.mxu0 %v970
        %1309 = vmatmul.mubr.bf16.gmra.mrb[0].mxu0 %v969
        %v1310 = vpop.f32.mrb[0].mxu0
        %v1311 = vadd.f32 %v1034, %v1310
        %v1312 = vpop.f32.mrb[0].mxu0
        %v1313 = vpop.f32.mrb[0].mxu0
        %v1314 = vadd.f32 %v1034, %v1313
        %v1315 = vpop.f32.mrb[0].mxu0
        %1316 = vmatprep.mubr.bf16.mxu0 %v972
        %1317 = vmatmul.mubr.bf16.gmra.mrb[0].mxu0 %v971
        %v1318 = vpop.f32.mrb[0].mxu0
        %v1319 = vadd.f32 %v1034, %v1318
        %v1320 = vpop.f32.mrb[0].mxu0
        %v1321 = vpop.f32.mrb[0].mxu0
        %v1322 = vadd.f32 %v1034, %v1321
        %v1323 = vpop.f32.mrb[0].mxu0
        %1324 = vmatprep.mubr.bf16.mxu0 %v974
        %1325 = vmatmul.mubr.bf16.gmra.mrb[0].mxu0 %v973
        %v1326 = vpop.f32.mrb[0].mxu0
        %v1327 = vadd.f32 %v1034, %v1326
        %v1328 = vpop.f32.mrb[0].mxu0
        %v1329 = vpop.f32.mrb[0].mxu0
        %v1330 = vadd.f32 %v1034, %v1329
        %v1331 = vpop.f32.mrb[0].mxu0
        %1332 = vmatprep.mubr.bf16.mxu0 %v976
        %1333 = vmatmul.mubr.bf16.gmra.mrb[0].mxu0 %v975
        %v1334 = vpop.f32.mrb[0].mxu0
        %v1335 = vadd.f32 %v1034, %v1334
        %v1336 = vpop.f32.mrb[0].mxu0
        %v1337 = vpop.f32.mrb[0].mxu0
        %v1338 = vadd.f32 %v1034, %v1337
        %v1339 = vpop.f32.mrb[0].mxu0
        %1340 = vmatprep.mubr.bf16.mxu0 %v978
        %1341 = vmatmul.mubr.bf16.gmra.mrb[0].mxu0 %v977
        %v1342 = vpop.f32.mrb[0].mxu0
        %v1343 = vadd.f32 %v1034, %v1342
        %v1344 = vpop.f32.mrb[0].mxu0
        %v1345 = vpop.f32.mrb[0].mxu0
        %v1346 = vadd.f32 %v1034, %v1345
        %v1347 = vpop.f32.mrb[0].mxu0
        %1348 = vmatprep.mubr.bf16.mxu0 %v980
        %1349 = vmatmul.mubr.bf16.gmra.mrb[0].mxu0 %v979
        %v1350 = vpop.f32.mrb[0].mxu0
        %v1351 = vadd.f32 %v1034, %v1350
        %v1352 = vpop.f32.mrb[0].mxu0
        %v1353 = vpop.f32.mrb[0].mxu0
        %v1354 = vadd.f32 %v1034, %v1353
        %v1355 = vpop.f32.mrb[0].mxu0
        %1356 = vmatprep.mubr.bf16.mxu0 %v982
        %1357 = vmatmul.mubr.bf16.gmra.mrb[0].mxu0 %v981
        %v1358 = vpop.f32.mrb[0].mxu0
        %v1359 = vadd.f32 %v1034, %v1358
        %v1360 = vpop.f32.mrb[0].mxu0
        %v1361 = vpop.f32.mrb[0].mxu0
        %v1362 = vadd.f32 %v1034, %v1361
        %v1363 = vpop.f32.mrb[0].mxu0
        %1364 = vmatprep.mubr.bf16.mxu0 %v984
        %1365 = vmatmul.mubr.bf16.gmra.mrb[0].mxu0 %v983
        %v1366 = vpop.f32.mrb[0].mxu0
        %v1367 = vadd.f32 %v1034, %v1366
        %v1368 = vpop.f32.mrb[0].mxu0
        %v1369 = vpop.f32.mrb[0].mxu0
        %v1370 = vadd.f32 %v1034, %v1369
        %v1371 = vpop.f32.mrb[0].mxu0
        %1372 = vmatprep.mubr.bf16.mxu0 %v986
        %1373 = vmatmul.mubr.bf16.gmra.mrb[0].mxu0 %v985
        %v1374 = vpop.f32.mrb[0].mxu0
        %v1375 = vadd.f32 %v1034, %v1374
        %v1376 = vpop.f32.mrb[0].mxu0
        %v1377 = vpop.f32.mrb[0].mxu0
        %v1378 = vadd.f32 %v1034, %v1377
        %v1379 = vpop.f32.mrb[0].mxu0
        %1380 = vmatprep.mubr.bf16.mxu0 %v988
        %1381 = vmatmul.mubr.bf16.gmra.mrb[0].mxu0 %v987
        %v1382 = vpop.f32.mrb[0].mxu0
        %v1383 = vadd.f32 %v1034, %v1382
        %v1384 = vpop.f32.mrb[0].mxu0
        %v1385 = vpop.f32.mrb[0].mxu0
        %v1386 = vadd.f32 %v1034, %v1385
        %v1387 = vpop.f32.mrb[0].mxu0
        %1388 = vmatprep.mubr.bf16.mxu0 %v990
        %1389 = vmatmul.mubr.bf16.gmra.mrb[0].mxu0 %v989
        %v1390 = vpop.f32.mrb[0].mxu0
        %v1391 = vadd.f32 %v1034, %v1390
        %v1392 = vpop.f32.mrb[0].mxu0
        %v1393 = vpop.f32.mrb[0].mxu0
        %v1394 = vadd.f32 %v1034, %v1393
        %v1395 = vpop.f32.mrb[0].mxu0
        %1396 = vmatprep.mubr.bf16.mxu0 %v992
        %1397 = vmatmul.mubr.bf16.gmra.mrb[0].mxu0 %v991
        %v1398 = vpop.f32.mrb[0].mxu0
        %v1399 = vadd.f32 %v1034, %v1398
        %v1400 = vpop.f32.mrb[0].mxu0
        %v1401 = vpop.f32.mrb[0].mxu0
        %v1402 = vadd.f32 %v1034, %v1401
        %v1403 = vpop.f32.mrb[0].mxu0
        %1404 = vmatprep.mubr.bf16.mxu0 %v994
        %1405 = vmatmul.mubr.bf16.gmra.mrb[0].mxu0 %v993
        %v1406 = vpop.f32.mrb[0].mxu0
        %v1407 = vadd.f32 %v1034, %v1406
        %v1408 = vpop.f32.mrb[0].mxu0
        %v1409 = vpop.f32.mrb[0].mxu0
        %v1410 = vadd.f32 %v1034, %v1409
        %v1411 = vpop.f32.mrb[0].mxu0
        %1412 = vmatprep.mubr.bf16.mxu0 %v996
        %1413 = vmatmul.mubr.bf16.gmra.mrb[0].mxu0 %v995
        %v1414 = vpop.f32.mrb[0].mxu0
        %v1415 = vadd.f32 %v1034, %v1414
        %v1416 = vpop.f32.mrb[0].mxu0
        %v1417 = vpop.f32.mrb[0].mxu0
        %v1418 = vadd.f32 %v1034, %v1417
        %v1419 = vpop.f32.mrb[0].mxu0
        %1420 = vdwg.mxu0
        %vm1421 = vcmask 261120
        %1422 = vst.msk [vmem:[%s245] sm:$0xff] %vm1421, %v1167
        %1423 = vst.msk [vmem:[%s245 + $0x8] sm:$0xff] %vm1421, %v1170
        %1424 = vst.msk [vmem:[%s245 + $0x10] sm:$0xff] %vm1421, %v1175
        %1425 = vst.msk [vmem:[%s245 + $0x18] sm:$0xff] %vm1421, %v1178
        %1426 = vst.msk [vmem:[%s245 + $0x20] sm:$0xff] %vm1421, %v1183
        %1427 = vst.msk [vmem:[%s245 + $0x28] sm:$0xff] %vm1421, %v1186
        %1428 = vst.msk [vmem:[%s245 + $0x30] sm:$0xff] %vm1421, %v1191
        %1429 = vst.msk [vmem:[%s245 + $0x38] sm:$0xff] %vm1421, %v1194
        %1430 = vst.msk [vmem:[%s245 + $0x40] sm:$0xff] %vm1421, %v1199
        %1431 = vst.msk [vmem:[%s245 + $0x48] sm:$0xff] %vm1421, %v1202
        %1432 = vst.msk [vmem:[%s245 + $0x50] sm:$0xff] %vm1421, %v1207
        %1433 = vst.msk [vmem:[%s245 + $0x58] sm:$0xff] %vm1421, %v1210
        %1434 = vst.msk [vmem:[%s245 + $0x60] sm:$0xff] %vm1421, %v1215
        %1435 = vst.msk [vmem:[%s245 + $0x68] sm:$0xff] %vm1421, %v1218
        %1436 = vst.msk [vmem:[%s245 + $0x70] sm:$0xff] %vm1421, %v1223
        %1437 = vst.msk [vmem:[%s245 + $0x78] sm:$0xff] %vm1421, %v1226
        %1438 = vst.msk [vmem:[%s245 + $0x80] sm:$0xff] %vm1421, %v1231
        %1439 = vst.msk [vmem:[%s245 + $0x88] sm:$0xff] %vm1421, %v1234
        %1440 = vst.msk [vmem:[%s245 + $0x90] sm:$0xff] %vm1421, %v1239
        %1441 = vst.msk [vmem:[%s245 + $0x98] sm:$0xff] %vm1421, %v1242
        %1442 = vst.msk [vmem:[%s245 + $0xa0] sm:$0xff] %vm1421, %v1247
        %1443 = vst.msk [vmem:[%s245 + $0xa8] sm:$0xff] %vm1421, %v1250
        %1444 = vst.msk [vmem:[%s245 + $0xb0] sm:$0xff] %vm1421, %v1255
        %1445 = vst.msk [vmem:[%s245 + $0xb8] sm:$0xff] %vm1421, %v1258
        %1446 = vst.msk [vmem:[%s245 + $0xc0] sm:$0xff] %vm1421, %v1263
        %1447 = vst.msk [vmem:[%s245 + $0xc8] sm:$0xff] %vm1421, %v1266
        %1448 = vst.msk [vmem:[%s245 + $0xd0] sm:$0xff] %vm1421, %v1271
        %1449 = vst.msk [vmem:[%s245 + $0xd8] sm:$0xff] %vm1421, %v1274
        %1450 = vst.msk [vmem:[%s245 + $0xe0] sm:$0xff] %vm1421, %v1279
        %1451 = vst.msk [vmem:[%s245 + $0xe8] sm:$0xff] %vm1421, %v1282
        %1452 = vst.msk [vmem:[%s245 + $0xf0] sm:$0xff] %vm1421, %v1287
        %1453 = vst.msk [vmem:[%s245 + $0xf8] sm:$0xff] %vm1421, %v1290
        %1454 = vst.msk [vmem:[%s245 + $0x100] sm:$0xff] %vm1421, %v1295
        %1455 = vst.msk [vmem:[%s245 + $0x108] sm:$0xff] %vm1421, %v1298
        %1456 = vst.msk [vmem:[%s245 + $0x110] sm:$0xff] %vm1421, %v1303
        %1457 = vst.msk [vmem:[%s245 + $0x118] sm:$0xff] %vm1421, %v1306
        %1458 = vst.msk [vmem:[%s245 + $0x120] sm:$0xff] %vm1421, %v1311
        %1459 = vst.msk [vmem:[%s245 + $0x128] sm:$0xff] %vm1421, %v1314
        %1460 = vst.msk [vmem:[%s245 + $0x130] sm:$0xff] %vm1421, %v1319
        %1461 = vst.msk [vmem:[%s245 + $0x138] sm:$0xff] %vm1421, %v1322
        %1462 = vst.msk [vmem:[%s245 + $0x140] sm:$0xff] %vm1421, %v1327
        %1463 = vst.msk [vmem:[%s245 + $0x148] sm:$0xff] %vm1421, %v1330
        %1464 = vst.msk [vmem:[%s245 + $0x150] sm:$0xff] %vm1421, %v1335
        %1465 = vst.msk [vmem:[%s245 + $0x158] sm:$0xff] %vm1421, %v1338
        %1466 = vst.msk [vmem:[%s245 + $0x160] sm:$0xff] %vm1421, %v1343
        %1467 = vst.msk [vmem:[%s245 + $0x168] sm:$0xff] %vm1421, %v1346
        %1468 = vst.msk [vmem:[%s245 + $0x170] sm:$0xff] %vm1421, %v1351
        %1469 = vst.msk [vmem:[%s245 + $0x178] sm:$0xff] %vm1421, %v1354
        %1470 = vst.msk [vmem:[%s245 + $0x180] sm:$0xff] %vm1421, %v1359
        %1471 = vst.msk [vmem:[%s245 + $0x188] sm:$0xff] %vm1421, %v1362
        %1472 = vst.msk [vmem:[%s245 + $0x190] sm:$0xff] %vm1421, %v1367
        %1473 = vst.msk [vmem:[%s245 + $0x198] sm:$0xff] %vm1421, %v1370
        %1474 = vst.msk [vmem:[%s245 + $0x1a0] sm:$0xff] %vm1421, %v1375
        %1475 = vst.msk [vmem:[%s245 + $0x1a8] sm:$0xff] %vm1421, %v1378
        %1476 = vst.msk [vmem:[%s245 + $0x1b0] sm:$0xff] %vm1421, %v1383
        %1477 = vst.msk [vmem:[%s245 + $0x1b8] sm:$0xff] %vm1421, %v1386
        %1478 = vst.msk [vmem:[%s245 + $0x1c0] sm:$0xff] %vm1421, %v1391
        %1479 = vst.msk [vmem:[%s245 + $0x1c8] sm:$0xff] %vm1421, %v1394
        %1480 = vst.msk [vmem:[%s245 + $0x1d0] sm:$0xff] %vm1421, %v1399
        %1481 = vst.msk [vmem:[%s245 + $0x1d8] sm:$0xff] %vm1421, %v1402
        %1482 = vst.msk [vmem:[%s245 + $0x1e0] sm:$0xff] %vm1421, %v1407
        %1483 = vst.msk [vmem:[%s245 + $0x1e8] sm:$0xff] %vm1421, %v1410
        %1484 = vst.msk [vmem:[%s245 + $0x1f0] sm:$0xff] %vm1421, %v1415
        %1485 = vst.msk [vmem:[%s245 + $0x1f8] sm:$0xff] %vm1421, %v1418
        %s1486 = smul.u32 64, %s19
        %p1487 = scmp.lt.s32.totalorder %s1486, 127
        %s1488 = scalar_select %p1487, %s1486, 127
        %s1489 = smul.addr %s1488, 8
        %s1490 = scalar_lea.vmem %s5, %s1489
        // Predicated region
        $region45: #{model_base_forward.1} parent=39 // pred_check
          %p1491 = pneg %p147
        $region46: #{model_base_forward.1} parent=39 // pred_check_branch
          %1493 = sbr.rel (%p1491) target = $region48
        $region47: #{model_base_forward.1} parent=39 // pred_region
          %s1494 = smul.u32 64, %s19
        $region48: #{model_base_forward.1} parent=39 // pred_fallthru
          _
      $region40: #{model_base_forward.1} parent=5 // pred_fallthru
        _
      %p1495 = scmp.le.s32.totalorder 2, %s14
      // Predicated region
      $region49: #{model_base_forward.1} parent=5 // pred_check
        %p1496 = pneg %p1495
      $region50: #{model_base_forward.1} parent=5 // pred_check_branch
        %1498 = sbr.rel (%p1496) target = $region52
      $region51: #{model_base_forward.1} parent=5 // pred_region
        %s1499 = ssub.s32 %s14, 2
        // Predicated region
        $region53: #{model_base_forward.1} parent=51 // pred_check
          %p1500 = pneg %p153
        $region54: #{model_base_forward.1} parent=51 // pred_check_branch
          %1502 = sbr.rel (%p1500) target = $region56
        $region55: #{model_base_forward.1} parent=51 // pred_region
          %s1503 = smul.u32 64, %s20
          %p1504 = scmp.lt.s32.totalorder %s1503, 127
          %s1505 = scalar_select %p1504, %s1503, 127
          %s1506 = smul.addr %s1505, 8
          %s1507 = scalar_lea.vmem %s5, %s1506
        $region56: #{model_base_forward.1} parent=51 // pred_fallthru
          _
      $region52: #{model_base_forward.1} parent=5 // pred_fallthru
        _
    $region6: #{model_base_forward.1} parent=1 // loop_footer
      %s18 = sadd.s32 1, %s14
    $region7: #{model_base_forward.1} parent=1 // loop_footer_branch
      %13 = sbr.rel target = $region3
    $region8: #{model_base_forward.1} parent=1 // loop_exit
      _
    %1508 = vsyncpa [#allocation3], 1
    %s1509 = scalar_lea.sflag [#allocation3], 1
    %1510 = vsyncpa %s1509, 1

</llo_original>
